<compile_context>
chip_gen: v7x
topology: tpu7x:2x2x1
jax: 0.10.0
libtpu: 0.0.40
codegen_flags: <defaults>
</compile_context>

<pallas_src>
import functools
import math

import jax
import jax.numpy as jnp
from jax.experimental import pallas as pl
from jax.experimental.pallas import tpu as pltpu


def mha_tile_kernel(x_ref,                         # (TILE_M, E)
                    kbias_ref,                     # (1, 1, TILE_M) key-padding bias
                    wqkv_ref, bqkv_ref,            # (H, E, 3D), (H, 1, 3D)  (Q scale folded)
                    wo_ref, bo_ref,                # (H, D, E), (1, E)
                    wfc_ref, bfc_ref,              # (E, E) pre-transposed, (1, E)
                    gamma_ref, beta_ref,           # (1, E), (1, E)
                    o_ref,                         # (TILE_M, E)
                    *, num_heads, head_dim, seq_len, bpt, eps):
    H = num_heads
    D = head_dim
    S = seq_len
    TILE_M = bpt * S

    x = x_ref[...]                                             # (M, E) f32
    E = x.shape[-1]

    # ---- fused Q/K/V projection, head-batched on the MXU (one dot, N = 3D) ----
    xb = jnp.broadcast_to(x, (H, TILE_M, E))                   # broadcast once per step
    qkv = jax.lax.dot_general(
        xb, wqkv_ref[...], (((2,), (1,)), ((0,), (0,))),
        preferred_element_type=jnp.float32) + bqkv_ref[...]    # (H, M, 3D)
    q = qkv[..., :D]                                           # scale already folded in
    k = qkv[..., D:2 * D]
    v = qkv[..., 2 * D:]

    # ---- scores (H, M, M); bf16 MXU inputs, f32 accumulation ----
    s = jax.lax.dot_general(
        q.astype(jnp.bfloat16), k.astype(jnp.bfloat16),
        (((2,), (2,)), ((0,), (0,))),
        preferred_element_type=jnp.float32)

    # ---- additive mask: key-padding bias (precomputed on host from lens,
    #      BlockSpec-sliced) + block-diagonal over packed batch elements ----
    kb = kbias_ref[0]                                          # (1, TILE_M) f32
    if bpt > 1:
        row = jax.lax.broadcasted_iota(jnp.int32, (TILE_M, TILE_M), 0)
        col = jax.lax.broadcasted_iota(jnp.int32, (TILE_M, TILE_M), 1)
        same_batch = (row // S) == (col // S)                  # S is static (shift if pow2)
        mask_bias = jnp.where(same_batch, jnp.float32(0.0),
                              jnp.float32(-1e30)) + kb         # (M, M)
    else:
        mask_bias = kb                                         # (1, M) broadcast over rows
    s = s + mask_bias                                          # broadcasts over heads

    # ---- softmax over keys (f32 elementwise — v5e-safe; reciprocal on EUP) ----
    s = s - jnp.max(s, axis=-1, keepdims=True)
    p = jnp.exp(s)
    p = p * pl.reciprocal(jnp.sum(p, axis=-1, keepdims=True), approx=True)

    # ---- attention values per head: (H, M, D); bf16 MXU inputs ----
    a = jax.lax.dot_general(
        p.astype(jnp.bfloat16), v.astype(jnp.bfloat16),
        (((2,), (1,)), ((0,), (0,))),
        preferred_element_type=jnp.float32)

    # ---- out_proj applied per head and summed (folds the head concat away) ----
    oh = jax.lax.dot_general(a, wo_ref[...], (((2,), (1,)), ((0,), (0,))),
                             preferred_element_type=jnp.float32)   # (H, M, E)
    attn_out = jnp.sum(oh, axis=0) + bo_ref[...]                   # (M, E)

    # ---- fc (+ dropout: identity at eval); wfc pre-transposed on host ----
    fc = jnp.dot(attn_out, wfc_ref[...],
                 preferred_element_type=jnp.float32) + bfc_ref[...]

    # ---- residual + LayerNorm over the embedding dim ----
    y = fc + x
    mu = jnp.mean(y, axis=-1, keepdims=True)
    var = jnp.mean((y - mu) * (y - mu), axis=-1, keepdims=True)
    yn = (y - mu) * jax.lax.rsqrt(var + eps)
    o_ref[...] = (yn * gamma_ref[...] + beta_ref[...]).astype(o_ref.dtype)


def multi_head_attention(x, lens, params, *, num_heads=4, eps=1e-5, tile_rows=128):
    """x: (B, S, E) float32, lens: (B,) int. Returns (B, S, E).

    tile_rows: target rows (batch*seq) per grid step.  128 fills the v5e MXU
    and is a good default on v6e/v7x when S is small (the block-diagonal
    waste factor is TILE_M/S, so only raise toward 256 when S >= ~128).
    If TILE_M / E / S are ever scaled well past that, set
    pltpu.CompilerParams(vmem_limit_bytes=...) explicitly — v7x has only
    64 MiB physical VMEM.
    """
    B, S, E = x.shape
    H = num_heads
    D = E // H
    wqkv, bqkv, wo, bo, wfc, bfc, gamma, beta = params

    # ---- host-side (one-time) weight prep: per-head split, transposes,
    #      fused QKV stack, and folding 1/sqrt(D) into the Q projection ----
    scale = 1.0 / math.sqrt(D)
    w3 = wqkv.reshape(3, H, D, E)                       # (3, H, D, E)
    b3 = bqkv.reshape(3, H, D)                          # (3, H, D)
    wq = jnp.transpose(w3[0], (0, 2, 1)) * scale        # (H, E, D), scale folded
    wk = jnp.transpose(w3[1], (0, 2, 1))                # (H, E, D)
    wv = jnp.transpose(w3[2], (0, 2, 1))                # (H, E, D)
    wqkv_s = jnp.concatenate([wq, wk, wv], axis=-1)     # (H, E, 3D)  fused RHS
    bqkv_s = jnp.concatenate([b3[0] * scale, b3[1], b3[2]],
                             axis=-1)[:, None, :]       # (H, 1, 3D)
    wo_r = wo.T.reshape(H, D, E)                        # wo_r[h,d,:] = wo[:, h*D+d]
    wfc_t = wfc.T                                       # (E_in, E_out)

    # ---- tile sizing: pack several batch elements per grid step ----
    bpt = min(B, max(1, tile_rows // S))                # batch elements per tile
    if bpt >= B and B >= 2:
        bpt = B // 2                                    # >= 2 grid tiles (v7x: 2 TCs)
    sub = 8 // math.gcd(S, 8)                           # TILE_M must be a multiple of 8
    bpt = max(sub, (bpt // sub) * sub)
    TILE_M = bpt * S
    assert TILE_M % 8 == 0
    B_pad = ((B + bpt - 1) // bpt) * bpt                # pad B instead of degrading bpt
    num_tiles = B_pad // bpt

    # ---- host-side inputs: flattened rows + per-key padding bias from lens ----
    x2 = x.reshape(B * S, E)
    pos = jnp.arange(S, dtype=jnp.int32)[None, :]
    kb = jnp.where(pos < lens.astype(jnp.int32)[:, None],
                   0.0, -1e30).astype(jnp.float32)      # (B, S): 0 = keep, -1e30 = pad
    if B_pad > B:
        x2 = jnp.concatenate(
            [x2, jnp.zeros(((B_pad - B) * S, E), x.dtype)], axis=0)
        kb = jnp.concatenate(
            [kb, jnp.zeros((B_pad - B, S), jnp.float32)], axis=0)
    kb3 = kb.reshape(num_tiles, 1, TILE_M)              # lane-dense per-tile slices

    kernel = functools.partial(mha_tile_kernel, num_heads=H, head_dim=D,
                               seq_len=S, bpt=bpt, eps=eps)

    def full2(shape):
        return pl.BlockSpec(shape, lambda i: (0, 0))

    def full3(shape):
        return pl.BlockSpec(shape, lambda i: (0, 0, 0))

    grid_spec = pltpu.PrefetchScalarGridSpec(
        num_scalar_prefetch=0,
        grid=(num_tiles,),
        in_specs=[
            pl.BlockSpec((TILE_M, E), lambda i: (i, 0)),         # x rows
            pl.BlockSpec((1, 1, TILE_M), lambda i: (i, 0, 0)),   # key-padding bias
            full3((H, E, 3 * D)), full3((H, 1, 3 * D)),          # fused wqkv, bqkv
            full3((H, D, E)), full2((1, E)),                     # wo, bo
            full2((E, E)), full2((1, E)),                        # wfc^T, bfc
            full2((1, E)), full2((1, E)),                        # gamma, beta
        ],
        out_specs=pl.BlockSpec((TILE_M, E), lambda i: (i, 0)),
    )

    out2 = pl.pallas_call(
        kernel,
        out_shape=jax.ShapeDtypeStruct((B_pad * S, E), x.dtype),
        grid_spec=grid_spec,
        compiler_params=pltpu.CompilerParams(dimension_semantics=("parallel",)),
    )(x2, kb3, wqkv_s, bqkv_s, wo_r, bo, wfc_t, bfc, gamma, beta)

    return out2[:B * S].reshape(B, S, E)


def reference(x, lens, params, *, num_heads=4, eps=1e-5):
    """Pure-JAX reference (same eval semantics as the PyTorch module)."""
    B, S, E = x.shape
    D = E // num_heads
    wqkv, bqkv, wo, bo, wfc, bfc, gamma, beta = params
    pos = jnp.arange(S)[None, :]
    bias = jnp.where(pos < lens[:, None], 0.0, -1e30)[:, None, None, :]  # (B,1,1,S)

    qkv = x @ wqkv.T + bqkv[0]
    q, k, v = qkv[..., :E], qkv[..., E:2 * E], qkv[..., 2 * E:]

    def split(t):  # (B, S, E) -> (B, H, S, D)
        return t.reshape(B, S, num_heads, D).transpose(0, 2, 1, 3)

    qh, kh, vh = split(q), split(k), split(v)
    s = jnp.einsum("bhqd,bhkd->bhqk", qh, kh) / math.sqrt(D) + bias
    p = jax.nn.softmax(s, axis=-1)
    attn = jnp.einsum("bhqk,bhkd->bhqd", p, vh).transpose(0, 2, 1, 3).reshape(B, S, E)
    attn = attn @ wo.T + bo[0]
    fc = attn @ wfc.T + bfc[0]
    y = fc + x
    mu = jnp.mean(y, axis=-1, keepdims=True)
    var = jnp.mean((y - mu) ** 2, axis=-1, keepdims=True)
    return (y - mu) * jax.lax.rsqrt(var + eps) * gamma[0] + beta[0]


if __name__ == "__main__":
    B, S, E, H = 2, 8, 32, 4          # seq == max_seq_len (required by the module)

    key = jax.random.PRNGKey(0)
    keys = jax.random.split(key, 8)

    x = jax.random.normal(keys[0], (B, S, E), dtype=jnp.float32)
    lens = jnp.array([S, 5], dtype=jnp.int32)

    # Deterministic synthetic parameters (shapes follow nn.MultiheadAttention /
    # nn.Linear / nn.LayerNorm).
    wqkv = 0.1 * jax.random.normal(keys[1], (3 * E, E), dtype=jnp.float32)
    bqkv = 0.1 * jax.random.normal(keys[2], (1, 3 * E), dtype=jnp.float32)
    wo = 0.1 * jax.random.normal(keys[3], (E, E), dtype=jnp.float32)
    bo = 0.1 * jax.random.normal(keys[4], (1, E), dtype=jnp.float32)
    wfc = 0.1 * jax.random.normal(keys[5], (E, E), dtype=jnp.float32)
    bfc = 0.1 * jax.random.normal(keys[6], (1, E), dtype=jnp.float32)
    gamma = jnp.ones((1, E), dtype=jnp.float32)   # LayerNorm defaults
    beta = jnp.zeros((1, E), dtype=jnp.float32)

    params = (wqkv, bqkv, wo, bo, wfc, bfc, gamma, beta)

    out = multi_head_attention(x, lens, params, num_heads=H)
    out = jax.block_until_ready(out)

    ref = reference(x, lens, params, num_heads=H)
    assert out.shape == (B, S, E)
    # Tolerance accounts for bf16 MXU inputs in the attention matmuls and the
    # approximate EUP reciprocal in the softmax (both ~1e-3-level).
    assert jnp.allclose(out, ref, atol=1e-2, rtol=1e-2), "mismatch vs pure-JAX reference"

    print("KERNEL_OK")
</pallas_src>

<mosaic_0001>
module attributes {stable_mosaic.version = 11 : i64} {
  func.func @mha_tile_kernel(%arg0: i32, %arg1: memref<8x32xf32, #tpu.memory_space<vmem>>, %arg2: memref<1x1x8xf32, #tpu.memory_space<vmem>>, %arg3: memref<4x32x24xf32, #tpu.memory_space<vmem>>, %arg4: memref<4x1x24xf32, #tpu.memory_space<vmem>>, %arg5: memref<4x8x32xf32, #tpu.memory_space<vmem>>, %arg6: memref<1x32xf32, #tpu.memory_space<vmem>>, %arg7: memref<32x32xf32, #tpu.memory_space<vmem>>, %arg8: memref<1x32xf32, #tpu.memory_space<vmem>>, %arg9: memref<1x32xf32, #tpu.memory_space<vmem>>, %arg10: memref<1x32xf32, #tpu.memory_space<vmem>>, %arg11: memref<8x32xf32, #tpu.memory_space<vmem>>) attributes {dimension_semantics = [#tpu.dimension_semantics<parallel>], iteration_bounds = array<i64: 2>, scalar_prefetch = 0 : i64, scratch_operands = 0 : i64, tpu.core_type = #tpu.core_type<tc>, window_params = [{transform_indices = @transform_0, window_bounds = array<i64: 8, 32>}, {transform_indices = @transform_1, window_bounds = array<i64: 1, 1, 8>}, {pipeline_mode = #tpu.pipeline_mode<synchronous>, transform_indices = @transform_2, window_bounds = array<i64: 4, 32, 24>}, {pipeline_mode = #tpu.pipeline_mode<synchronous>, transform_indices = @transform_3, window_bounds = array<i64: 4, 1, 24>}, {pipeline_mode = #tpu.pipeline_mode<synchronous>, transform_indices = @transform_4, window_bounds = array<i64: 4, 8, 32>}, {pipeline_mode = #tpu.pipeline_mode<synchronous>, transform_indices = @transform_5, window_bounds = array<i64: 1, 32>}, {pipeline_mode = #tpu.pipeline_mode<synchronous>, transform_indices = @transform_6, window_bounds = array<i64: 32, 32>}, {pipeline_mode = #tpu.pipeline_mode<synchronous>, transform_indices = @transform_7, window_bounds = array<i64: 1, 32>}, {pipeline_mode = #tpu.pipeline_mode<synchronous>, transform_indices = @transform_8, window_bounds = array<i64: 1, 32>}, {pipeline_mode = #tpu.pipeline_mode<synchronous>, transform_indices = @transform_9, window_bounds = array<i64: 1, 32>}, {transform_indices = @transform_10, window_bounds = array<i64: 8, 32>}]} {
    %c0 = arith.constant 0 : index
    %c0_0 = arith.constant 0 : index
    %0 = vector.load %arg1[%c0, %c0_0] : memref<8x32xf32, #tpu.memory_space<vmem>>, vector<8x32xf32>
    %1 = vector.shape_cast %0 : vector<8x32xf32> to vector<1x8x32xf32>
    %2 = vector.broadcast %1 : vector<1x8x32xf32> to vector<4x8x32xf32>
    %c0_1 = arith.constant 0 : index
    %c0_2 = arith.constant 0 : index
    %c0_3 = arith.constant 0 : index
    %3 = vector.load %arg3[%c0_1, %c0_2, %c0_3] : memref<4x32x24xf32, #tpu.memory_space<vmem>>, vector<4x32x24xf32>
    %cst = arith.constant dense<0.000000e+00> : vector<4x8x24xf32>
    %4 = tpu.matmul %2, %3, %cst {dimension_numbers = #tpu.dot_dimension_numbers<[2], [1], [1], [2], [0, 0, 0, 1, 1, 2], [0], [0]>} : vector<4x8x32xf32>, vector<4x32x24xf32>, vector<4x8x24xf32> -> vector<4x8x24xf32>
    %c0_4 = arith.constant 0 : index
    %c0_5 = arith.constant 0 : index
    %c0_6 = arith.constant 0 : index
    %5 = vector.load %arg4[%c0_4, %c0_5, %c0_6] : memref<4x1x24xf32, #tpu.memory_space<vmem>>, vector<4x1x24xf32>
    %6 = vector.broadcast %5 : vector<4x1x24xf32> to vector<4x8x24xf32>
    %7 = arith.addf %4, %6 : vector<4x8x24xf32>
    %8 = vector.extract_strided_slice %7 {offsets = [0, 0, 0], sizes = [4, 8, 8], strides = [1, 1, 1]} : vector<4x8x24xf32> to vector<4x8x8xf32>
    %9 = vector.extract_strided_slice %7 {offsets = [0, 0, 8], sizes = [4, 8, 8], strides = [1, 1, 1]} : vector<4x8x24xf32> to vector<4x8x8xf32>
    %10 = vector.extract_strided_slice %7 {offsets = [0, 0, 16], sizes = [4, 8, 8], strides = [1, 1, 1]} : vector<4x8x24xf32> to vector<4x8x8xf32>
    %11 = arith.truncf %8 : vector<4x8x8xf32> to vector<4x8x8xbf16>
    %12 = arith.truncf %9 : vector<4x8x8xf32> to vector<4x8x8xbf16>
    %cst_7 = arith.constant dense<0.000000e+00> : vector<4x8x8xf32>
    %13 = tpu.matmul %11, %12, %cst_7 {dimension_numbers = #tpu.dot_dimension_numbers<[2], [2], [1], [1], [0, 0, 0, 1, 1, 1], [0], [0]>} : vector<4x8x8xbf16>, vector<4x8x8xbf16>, vector<4x8x8xf32> -> vector<4x8x8xf32>
    %c0_8 = arith.constant 0 : index
    %c0_9 = arith.constant 0 : index
    %c0_10 = arith.constant 0 : index
    %14 = vector.load %arg2[%c0_8, %c0_9, %c0_10] : memref<1x1x8xf32, #tpu.memory_space<vmem>>, vector<1x1x8xf32>
    %15 = vector.shape_cast %14 : vector<1x1x8xf32> to vector<1x8xf32>
    %16 = vector.shape_cast %15 : vector<1x8xf32> to vector<1x1x8xf32>
    %17 = vector.broadcast %16 : vector<1x1x8xf32> to vector<4x8x8xf32>
    %18 = arith.addf %13, %17 : vector<4x8x8xf32>
    %cst_11 = arith.constant dense<0xFF800000> : vector<4x8xf32>
    %19 = vector.multi_reduction <maximumf>, %18, %cst_11 [2] : vector<4x8x8xf32> to vector<4x8xf32>
    %20 = vector.shape_cast %19 : vector<4x8xf32> to vector<4x8x1xf32>
    %21 = vector.broadcast %20 : vector<4x8x1xf32> to vector<4x8x8xf32>
    %22 = arith.subf %18, %21 : vector<4x8x8xf32>
    %23 = math.exp %22 : vector<4x8x8xf32>
    %cst_12 = arith.constant dense<0.000000e+00> : vector<4x8xf32>
    %24 = vector.multi_reduction <add>, %23, %cst_12 [2] : vector<4x8x8xf32> to vector<4x8xf32>
    %25 = vector.shape_cast %24 : vector<4x8xf32> to vector<4x8x1xf32>
    %26 = tpu.reciprocal %25 {approx = true} : vector<4x8x1xf32> -> vector<4x8x1xf32>
    %27 = vector.broadcast %26 : vector<4x8x1xf32> to vector<4x8x8xf32>
    %28 = arith.mulf %23, %27 : vector<4x8x8xf32>
    %29 = arith.truncf %28 : vector<4x8x8xf32> to vector<4x8x8xbf16>
    %30 = arith.truncf %10 : vector<4x8x8xf32> to vector<4x8x8xbf16>
    %cst_13 = arith.constant dense<0.000000e+00> : vector<4x8x8xf32>
    %31 = tpu.matmul %29, %30, %cst_13 {dimension_numbers = #tpu.dot_dimension_numbers<[2], [1], [1], [2], [0, 0, 0, 1, 1, 2], [0], [0]>} : vector<4x8x8xbf16>, vector<4x8x8xbf16>, vector<4x8x8xf32> -> vector<4x8x8xf32>
    %c0_14 = arith.constant 0 : index
    %c0_15 = arith.constant 0 : index
    %c0_16 = arith.constant 0 : index
    %32 = vector.load %arg5[%c0_14, %c0_15, %c0_16] : memref<4x8x32xf32, #tpu.memory_space<vmem>>, vector<4x8x32xf32>
    %cst_17 = arith.constant dense<0.000000e+00> : vector<4x8x32xf32>
    %33 = tpu.matmul %31, %32, %cst_17 {dimension_numbers = #tpu.dot_dimension_numbers<[2], [1], [1], [2], [0, 0, 0, 1, 1, 2], [0], [0]>} : vector<4x8x8xf32>, vector<4x8x32xf32>, vector<4x8x32xf32> -> vector<4x8x32xf32>
    %cst_18 = arith.constant dense<0.000000e+00> : vector<8x32xf32>
    %34 = vector.multi_reduction <add>, %33, %cst_18 [0] : vector<4x8x32xf32> to vector<8x32xf32>
    %c0_19 = arith.constant 0 : index
    %c0_20 = arith.constant 0 : index
    %35 = vector.load %arg6[%c0_19, %c0_20] : memref<1x32xf32, #tpu.memory_space<vmem>>, vector<1x32xf32>
    %36 = vector.broadcast %35 : vector<1x32xf32> to vector<8x32xf32>
    %37 = arith.addf %34, %36 : vector<8x32xf32>
    %c0_21 = arith.constant 0 : index
    %c0_22 = arith.constant 0 : index
    %38 = vector.load %arg7[%c0_21, %c0_22] : memref<32x32xf32, #tpu.memory_space<vmem>>, vector<32x32xf32>
    %cst_23 = arith.constant dense<0.000000e+00> : vector<8x32xf32>
    %39 = tpu.matmul %37, %38, %cst_23 {dimension_numbers = #tpu.dot_dimension_numbers<[1], [0], [0], [1], [0, 0, 1, 1], [], []>} : vector<8x32xf32>, vector<32x32xf32>, vector<8x32xf32> -> vector<8x32xf32>
    %c0_24 = arith.constant 0 : index
    %c0_25 = arith.constant 0 : index
    %40 = vector.load %arg8[%c0_24, %c0_25] : memref<1x32xf32, #tpu.memory_space<vmem>>, vector<1x32xf32>
    %41 = vector.broadcast %40 : vector<1x32xf32> to vector<8x32xf32>
    %42 = arith.addf %39, %41 : vector<8x32xf32>
    %43 = arith.addf %42, %0 : vector<8x32xf32>
    %cst_26 = arith.constant dense<0.000000e+00> : vector<8xf32>
    %44 = vector.multi_reduction <add>, %43, %cst_26 [1] : vector<8x32xf32> to vector<8xf32>
    %45 = vector.shape_cast %44 : vector<8xf32> to vector<8x1xf32>
    %cst_27 = arith.constant 3.200000e+01 : f32
    %46 = vector.broadcast %cst_27 : f32 to vector<8x1xf32>
    %47 = arith.divf %45, %46 : vector<8x1xf32>
    %48 = vector.broadcast %47 : vector<8x1xf32> to vector<8x32xf32>
    %49 = arith.subf %43, %48 : vector<8x32xf32>
    %50 = vector.broadcast %47 : vector<8x1xf32> to vector<8x32xf32>
    %51 = arith.subf %43, %50 : vector<8x32xf32>
    %52 = arith.mulf %49, %51 : vector<8x32xf32>
    %cst_28 = arith.constant dense<0.000000e+00> : vector<8xf32>
    %53 = vector.multi_reduction <add>, %52, %cst_28 [1] : vector<8x32xf32> to vector<8xf32>
    %54 = vector.shape_cast %53 : vector<8xf32> to vector<8x1xf32>
    %cst_29 = arith.constant 3.200000e+01 : f32
    %55 = vector.broadcast %cst_29 : f32 to vector<8x1xf32>
    %56 = arith.divf %54, %55 : vector<8x1xf32>
    %57 = vector.broadcast %47 : vector<8x1xf32> to vector<8x32xf32>
    %58 = arith.subf %43, %57 : vector<8x32xf32>
    %cst_30 = arith.constant 9.99999974E-6 : f32
    %59 = vector.broadcast %cst_30 : f32 to vector<8x1xf32>
    %60 = arith.addf %56, %59 : vector<8x1xf32>
    %61 = math.rsqrt %60 : vector<8x1xf32>
    %62 = vector.broadcast %61 : vector<8x1xf32> to vector<8x32xf32>
    %63 = arith.mulf %58, %62 : vector<8x32xf32>
    %c0_31 = arith.constant 0 : index
    %c0_32 = arith.constant 0 : index
    %64 = vector.load %arg9[%c0_31, %c0_32] : memref<1x32xf32, #tpu.memory_space<vmem>>, vector<1x32xf32>
    %65 = vector.broadcast %64 : vector<1x32xf32> to vector<8x32xf32>
    %66 = arith.mulf %63, %65 : vector<8x32xf32>
    %c0_33 = arith.constant 0 : index
    %c0_34 = arith.constant 0 : index
    %67 = vector.load %arg10[%c0_33, %c0_34] : memref<1x32xf32, #tpu.memory_space<vmem>>, vector<1x32xf32>
    %68 = vector.broadcast %67 : vector<1x32xf32> to vector<8x32xf32>
    %69 = arith.addf %66, %68 : vector<8x32xf32>
    %c0_35 = arith.constant 0 : index
    %c0_36 = arith.constant 0 : index
    %70 = vector.load %arg11[%c0_35, %c0_36] : memref<8x32xf32, #tpu.memory_space<vmem>>, vector<8x32xf32>
    tpu.vector_store %arg11[%c0_35, %c0_36], %69 {strides = array<i32>} : memref<8x32xf32, #tpu.memory_space<vmem>>, vector<8x32xf32>,
    return
  }
  func.func @transform_0(%arg0: i32) -> (i32, i32) {
    %c0_i32 = arith.constant 0 : i32
    %c0_i32_0 = arith.constant 0 : i32
    return %arg0, %c0_i32 : i32, i32
  }
  func.func @transform_1(%arg0: i32) -> (i32, i32, i32) {
    %c0_i32 = arith.constant 0 : i32
    %c0_i32_0 = arith.constant 0 : i32
    %c0_i32_1 = arith.constant 0 : i32
    return %arg0, %c0_i32, %c0_i32_0 : i32, i32, i32
  }
  func.func @transform_2(%arg0: i32) -> (i32, i32, i32) {
    %c0_i32 = arith.constant 0 : i32
    %c0_i32_0 = arith.constant 0 : i32
    %c0_i32_1 = arith.constant 0 : i32
    %c0_i32_2 = arith.constant 0 : i32
    return %c0_i32, %c0_i32_0, %c0_i32_1 : i32, i32, i32
  }
  func.func @transform_3(%arg0: i32) -> (i32, i32, i32) {
    %c0_i32 = arith.constant 0 : i32
    %c0_i32_0 = arith.constant 0 : i32
    %c0_i32_1 = arith.constant 0 : i32
    %c0_i32_2 = arith.constant 0 : i32
    return %c0_i32, %c0_i32_0, %c0_i32_1 : i32, i32, i32
  }
  func.func @transform_4(%arg0: i32) -> (i32, i32, i32) {
    %c0_i32 = arith.constant 0 : i32
    %c0_i32_0 = arith.constant 0 : i32
    %c0_i32_1 = arith.constant 0 : i32
    %c0_i32_2 = arith.constant 0 : i32
    return %c0_i32, %c0_i32_0, %c0_i32_1 : i32, i32, i32
  }
  func.func @transform_5(%arg0: i32) -> (i32, i32) {
    %c0_i32 = arith.constant 0 : i32
    %c0_i32_0 = arith.constant 0 : i32
    %c0_i32_1 = arith.constant 0 : i32
    return %c0_i32, %c0_i32_0 : i32, i32
  }
  func.func @transform_6(%arg0: i32) -> (i32, i32) {
    %c0_i32 = arith.constant 0 : i32
    %c0_i32_0 = arith.constant 0 : i32
    %c0_i32_1 = arith.constant 0 : i32
    return %c0_i32, %c0_i32_0 : i32, i32
  }
  func.func @transform_7(%arg0: i32) -> (i32, i32) {
    %c0_i32 = arith.constant 0 : i32
    %c0_i32_0 = arith.constant 0 : i32
    %c0_i32_1 = arith.constant 0 : i32
    return %c0_i32, %c0_i32_0 : i32, i32
  }
  func.func @transform_8(%arg0: i32) -> (i32, i32) {
    %c0_i32 = arith.constant 0 : i32
    %c0_i32_0 = arith.constant 0 : i32
    %c0_i32_1 = arith.constant 0 : i32
    return %c0_i32, %c0_i32_0 : i32, i32
  }
  func.func @transform_9(%arg0: i32) -> (i32, i32) {
    %c0_i32 = arith.constant 0 : i32
    %c0_i32_0 = arith.constant 0 : i32
    %c0_i32_1 = arith.constant 0 : i32
    return %c0_i32, %c0_i32_0 : i32, i32
  }
  func.func @transform_10(%arg0: i32) -> (i32, i32) {
    %c0_i32 = arith.constant 0 : i32
    %c0_i32_0 = arith.constant 0 : i32
    return %arg0, %c0_i32 : i32, i32
  }
}

</mosaic_0001>

<llo_original>
// kernel: tpu_custom_call.1
$region0: #{tpu_custom_call.1}
  #allocation0 [shape = 'u32[]', space=smem, size = 0x4, offset = 0x4, fixed_abs, tag = 'smem constant byte address 0x4 - core index']
  #allocation1 [shape = 'u32[144,128]{1,0:T(1,128)}', space=vmem, size = 0x12000, scoped, tag = 'internal scratch']
  %s0 = inlined_call_operand.vmem [shape: f32[16,32], index: 0, kind: input, shape index: {}]
  %s1 = inlined_call_operand.vmem [shape: f32[2,1,8], index: 1, kind: input, shape index: {}]
  %s2 = inlined_call_operand.vmem [shape: f32[4,32,24], index: 2, kind: input, shape index: {}]
  %s3 = inlined_call_operand.vmem [shape: f32[4,1,24], index: 3, kind: input, shape index: {}]
  %s4 = inlined_call_operand.vmem [shape: f32[4,8,32], index: 4, kind: input, shape index: {}]
  %s5 = inlined_call_operand.vmem [shape: f32[1,32], index: 5, kind: input, shape index: {}]
  %s6 = inlined_call_operand.vmem [shape: f32[32,32], index: 6, kind: input, shape index: {}]
  %s7 = inlined_call_operand.vmem [shape: f32[1,32], index: 7, kind: input, shape index: {}]
  %s8 = inlined_call_operand.vmem [shape: f32[1,32], index: 8, kind: input, shape index: {}]
  %s9 = inlined_call_operand.vmem [shape: f32[1,32], index: 9, kind: input, shape index: {}]
  %s10 = inlined_call_operand.hbm [shape: f32[16,32], index: 10, kind: output, shape index: {}]
  %s11 = sld [smem:[#allocation0]]
  $region73: #{tpu_custom_call.1} parent=0
    _
  %s13 = ssub.s32 1, %s11
  %s14 = scalar_select 0, %s13, %s11
  $region1: #{tpu_custom_call.1} parent=0
    #allocation2 [shape = 'u8[8192]{0}', space=vmem, size = 0x2000, scoped, tag = 'output window, operand 0']
    #allocation3 [shape = 's32[2]{0}', space=sflag, size = 0x8, scoped, tag = 'scoped memory for tpu_custom_call.1']
    %15 = vsyncpa [#allocation3], 0
    %s16 = scalar_lea.sflag [#allocation3], 1
    %17 = vsyncpa %s16, 0
    loop: start=0, step=1, limit=4
    $region2: #{tpu_custom_call.1} parent=1 // loop_pre_header
      _
    $region3: #{tpu_custom_call.1} parent=1 // loop_header
      %s19 = sphi 0, %s23
      %p20 = scmp.ge.s32.totalorder %s19, 4
      %s29 = sphi 0, %s31
      %s32 = sphi 0, %s29
      %s33 = sphi 0, %s32
      %s49 = sphi 0, %s33
      %s55 = sphi 0, %s57
      %s58 = sphi 0, %s55
      %s59 = sphi 0, %s58
      %s75 = sphi 0, %s59
      %s79 = sphi 0, %s79
      %s81 = sphi 0, %s79
      %s82 = sphi 0, %s81
      %s96 = sphi 0, %s82
      %s100 = sphi 0, %s100
      %s102 = sphi 0, %s100
      %s103 = sphi 0, %s102
      %s117 = sphi 0, %s103
      %s121 = sphi 0, %s121
      %s123 = sphi 0, %s121
      %s124 = sphi 0, %s123
      %s138 = sphi 0, %s124
      %s142 = sphi 0, %s142
      %s144 = sphi 0, %s142
      %s145 = sphi 0, %s144
      %s159 = sphi 0, %s145
      %s163 = sphi 0, %s163
      %s165 = sphi 0, %s163
      %s166 = sphi 0, %s165
      %s180 = sphi 0, %s166
      %s184 = sphi 0, %s184
      %s186 = sphi 0, %s184
      %s187 = sphi 0, %s186
      %s201 = sphi 0, %s187
      %s205 = sphi 0, %s205
      %s207 = sphi 0, %s205
      %s208 = sphi 0, %s207
      %s222 = sphi 0, %s208
      %s226 = sphi 0, %s226
      %s228 = sphi 0, %s226
      %s229 = sphi 0, %s228
      %s243 = sphi 0, %s229
      %s249 = sphi 0, %s251
      %s252 = sphi 0, %s249
      %s253 = sphi 0, %s252
      %s269 = sphi 0, %s253
    $region4: #{tpu_custom_call.1} parent=1 // loop_header_branch
      %22 = sbr.rel (%p20) target = $region8
    $region5: #{tpu_custom_call.1} parent=1 // loop_body
      %s24 = ssub.s32 %s19, 1
      %s25 = ssub.s32 %s19, 2
      %s26 = sadd.s32 %s19, 1
      %s27 = ssub.s32 %s19, %s26
      %p28 = scmp.eq.s32.totalorder %s27, 0
      %s30 = sadd.s32 %s29, 1
      %s31 = scalar_select %p28, %s29, %s30
      %p34 = pneg %p28
      %p35 = scmp.eq.s32.totalorder %s19, 1
      %p36 = por %p34, %p35
      %p37 = scmp.ne.s32.totalorder %s29, %s32
      %p38 = scmp.eq.s32.totalorder %s19, 0
      %p39 = por %p37, %p38
      %p40 = scmp.ne.s32.totalorder %s29, %s32
      %p41 = scmp.eq.s32.totalorder %s24, 1
      %p42 = por %p40, %p41
      %p43 = scmp.ne.s32.totalorder %s32, %s33
      %p44 = scmp.eq.s32.totalorder %s24, 0
      %p45 = por %p43, %p44
      %p46 = scmp.ne.s32.totalorder %s32, %s33
      %p47 = scmp.eq.s32.totalorder %s25, 1
      %p48 = por %p46, %p47
      %p50 = scmp.ne.s32.totalorder %s33, %s49
      %p51 = scmp.eq.s32.totalorder %s25, 0
      %p52 = por %p50, %p51
      %s53 = ssub.s32 %s19, %s26
      %p54 = scmp.eq.s32.totalorder %s53, 0
      %s56 = sadd.s32 %s55, 1
      %s57 = scalar_select %p54, %s55, %s56
      %p60 = pneg %p54
      %p61 = scmp.eq.s32.totalorder %s19, 1
      %p62 = por %p60, %p61
      %p63 = scmp.ne.s32.totalorder %s55, %s58
      %p64 = scmp.eq.s32.totalorder %s19, 0
      %p65 = por %p63, %p64
      %p66 = scmp.ne.s32.totalorder %s55, %s58
      %p67 = scmp.eq.s32.totalorder %s24, 1
      %p68 = por %p66, %p67
      %p69 = scmp.ne.s32.totalorder %s58, %s59
      %p70 = scmp.eq.s32.totalorder %s24, 0
      %p71 = por %p69, %p70
      %p72 = scmp.ne.s32.totalorder %s58, %s59
      %p73 = scmp.eq.s32.totalorder %s25, 1
      %p74 = por %p72, %p73
      %p76 = scmp.ne.s32.totalorder %s59, %s75
      %p77 = scmp.eq.s32.totalorder %s25, 0
      %p78 = por %p76, %p77
      %s80 = sadd.s32 %s79, 1
      %p83 = scmp.eq.s32.totalorder %s19, 1
      %p84 = scmp.ne.s32.totalorder %s79, %s81
      %p85 = scmp.eq.s32.totalorder %s19, 0
      %p86 = por %p84, %p85
      %p87 = scmp.ne.s32.totalorder %s79, %s81
      %p88 = scmp.eq.s32.totalorder %s24, 1
      %p89 = por %p87, %p88
      %p90 = scmp.ne.s32.totalorder %s81, %s82
      %p91 = scmp.eq.s32.totalorder %s24, 0
      %p92 = por %p90, %p91
      %p93 = scmp.ne.s32.totalorder %s81, %s82
      %p94 = scmp.eq.s32.totalorder %s25, 1
      %p95 = por %p93, %p94
      %p97 = scmp.ne.s32.totalorder %s82, %s96
      %p98 = scmp.eq.s32.totalorder %s25, 0
      %p99 = por %p97, %p98
      %s101 = sadd.s32 %s100, 1
      %p104 = scmp.eq.s32.totalorder %s19, 1
      %p105 = scmp.ne.s32.totalorder %s100, %s102
      %p106 = scmp.eq.s32.totalorder %s19, 0
      %p107 = por %p105, %p106
      %p108 = scmp.ne.s32.totalorder %s100, %s102
      %p109 = scmp.eq.s32.totalorder %s24, 1
      %p110 = por %p108, %p109
      %p111 = scmp.ne.s32.totalorder %s102, %s103
      %p112 = scmp.eq.s32.totalorder %s24, 0
      %p113 = por %p111, %p112
      %p114 = scmp.ne.s32.totalorder %s102, %s103
      %p115 = scmp.eq.s32.totalorder %s25, 1
      %p116 = por %p114, %p115
      %p118 = scmp.ne.s32.totalorder %s103, %s117
      %p119 = scmp.eq.s32.totalorder %s25, 0
      %p120 = por %p118, %p119
      %s122 = sadd.s32 %s121, 1
      %p125 = scmp.eq.s32.totalorder %s19, 1
      %p126 = scmp.ne.s32.totalorder %s121, %s123
      %p127 = scmp.eq.s32.totalorder %s19, 0
      %p128 = por %p126, %p127
      %p129 = scmp.ne.s32.totalorder %s121, %s123
      %p130 = scmp.eq.s32.totalorder %s24, 1
      %p131 = por %p129, %p130
      %p132 = scmp.ne.s32.totalorder %s123, %s124
      %p133 = scmp.eq.s32.totalorder %s24, 0
      %p134 = por %p132, %p133
      %p135 = scmp.ne.s32.totalorder %s123, %s124
      %p136 = scmp.eq.s32.totalorder %s25, 1
      %p137 = por %p135, %p136
      %p139 = scmp.ne.s32.totalorder %s124, %s138
      %p140 = scmp.eq.s32.totalorder %s25, 0
      %p141 = por %p139, %p140
      %s143 = sadd.s32 %s142, 1
      %p146 = scmp.eq.s32.totalorder %s19, 1
      %p147 = scmp.ne.s32.totalorder %s142, %s144
      %p148 = scmp.eq.s32.totalorder %s19, 0
      %p149 = por %p147, %p148
      %p150 = scmp.ne.s32.totalorder %s142, %s144
      %p151 = scmp.eq.s32.totalorder %s24, 1
      %p152 = por %p150, %p151
      %p153 = scmp.ne.s32.totalorder %s144, %s145
      %p154 = scmp.eq.s32.totalorder %s24, 0
      %p155 = por %p153, %p154
      %p156 = scmp.ne.s32.totalorder %s144, %s145
      %p157 = scmp.eq.s32.totalorder %s25, 1
      %p158 = por %p156, %p157
      %p160 = scmp.ne.s32.totalorder %s145, %s159
      %p161 = scmp.eq.s32.totalorder %s25, 0
      %p162 = por %p160, %p161
      %s164 = sadd.s32 %s163, 1
      %p167 = scmp.eq.s32.totalorder %s19, 1
      %p168 = scmp.ne.s32.totalorder %s163, %s165
      %p169 = scmp.eq.s32.totalorder %s19, 0
      %p170 = por %p168, %p169
      %p171 = scmp.ne.s32.totalorder %s163, %s165
      %p172 = scmp.eq.s32.totalorder %s24, 1
      %p173 = por %p171, %p172
      %p174 = scmp.ne.s32.totalorder %s165, %s166
      %p175 = scmp.eq.s32.totalorder %s24, 0
      %p176 = por %p174, %p175
      %p177 = scmp.ne.s32.totalorder %s165, %s166
      %p178 = scmp.eq.s32.totalorder %s25, 1
      %p179 = por %p177, %p178
      %p181 = scmp.ne.s32.totalorder %s166, %s180
      %p182 = scmp.eq.s32.totalorder %s25, 0
      %p183 = por %p181, %p182
      %s185 = sadd.s32 %s184, 1
      %p188 = scmp.eq.s32.totalorder %s19, 1
      %p189 = scmp.ne.s32.totalorder %s184, %s186
      %p190 = scmp.eq.s32.totalorder %s19, 0
      %p191 = por %p189, %p190
      %p192 = scmp.ne.s32.totalorder %s184, %s186
      %p193 = scmp.eq.s32.totalorder %s24, 1
      %p194 = por %p192, %p193
      %p195 = scmp.ne.s32.totalorder %s186, %s187
      %p196 = scmp.eq.s32.totalorder %s24, 0
      %p197 = por %p195, %p196
      %p198 = scmp.ne.s32.totalorder %s186, %s187
      %p199 = scmp.eq.s32.totalorder %s25, 1
      %p200 = por %p198, %p199
      %p202 = scmp.ne.s32.totalorder %s187, %s201
      %p203 = scmp.eq.s32.totalorder %s25, 0
      %p204 = por %p202, %p203
      %s206 = sadd.s32 %s205, 1
      %p209 = scmp.eq.s32.totalorder %s19, 1
      %p210 = scmp.ne.s32.totalorder %s205, %s207
      %p211 = scmp.eq.s32.totalorder %s19, 0
      %p212 = por %p210, %p211
      %p213 = scmp.ne.s32.totalorder %s205, %s207
      %p214 = scmp.eq.s32.totalorder %s24, 1
      %p215 = por %p213, %p214
      %p216 = scmp.ne.s32.totalorder %s207, %s208
      %p217 = scmp.eq.s32.totalorder %s24, 0
      %p218 = por %p216, %p217
      %p219 = scmp.ne.s32.totalorder %s207, %s208
      %p220 = scmp.eq.s32.totalorder %s25, 1
      %p221 = por %p219, %p220
      %p223 = scmp.ne.s32.totalorder %s208, %s222
      %p224 = scmp.eq.s32.totalorder %s25, 0
      %p225 = por %p223, %p224
      %s227 = sadd.s32 %s226, 1
      %p230 = scmp.eq.s32.totalorder %s19, 1
      %p231 = scmp.ne.s32.totalorder %s226, %s228
      %p232 = scmp.eq.s32.totalorder %s19, 0
      %p233 = por %p231, %p232
      %p234 = scmp.ne.s32.totalorder %s226, %s228
      %p235 = scmp.eq.s32.totalorder %s24, 1
      %p236 = por %p234, %p235
      %p237 = scmp.ne.s32.totalorder %s228, %s229
      %p238 = scmp.eq.s32.totalorder %s24, 0
      %p239 = por %p237, %p238
      %p240 = scmp.ne.s32.totalorder %s228, %s229
      %p241 = scmp.eq.s32.totalorder %s25, 1
      %p242 = por %p240, %p241
      %p244 = scmp.ne.s32.totalorder %s229, %s243
      %p245 = scmp.eq.s32.totalorder %s25, 0
      %p246 = por %p244, %p245
      %s247 = ssub.s32 %s19, %s26
      %p248 = scmp.eq.s32.totalorder %s247, 0
      %s250 = sadd.s32 %s249, 1
      %s251 = scalar_select %p248, %s249, %s250
      %p254 = pneg %p248
      %p255 = scmp.eq.s32.totalorder %s19, 1
      %p256 = por %p254, %p255
      %p257 = scmp.ne.s32.totalorder %s249, %s252
      %p258 = scmp.eq.s32.totalorder %s19, 0
      %p259 = por %p257, %p258
      %p260 = scmp.ne.s32.totalorder %s249, %s252
      %p261 = scmp.eq.s32.totalorder %s24, 1
      %p262 = por %p260, %p261
      %p263 = scmp.ne.s32.totalorder %s252, %s253
      %p264 = scmp.eq.s32.totalorder %s24, 0
      %p265 = por %p263, %p264
      %p266 = scmp.ne.s32.totalorder %s252, %s253
      %p267 = scmp.eq.s32.totalorder %s25, 1
      %p268 = por %p266, %p267
      %p270 = scmp.ne.s32.totalorder %s253, %s269
      %p271 = scmp.eq.s32.totalorder %s25, 0
      %p272 = por %p270, %p271
      %p273 = scmp.le.s32.totalorder 1, %s19
      %p274 = scmp.lt.s32.totalorder %s19, 3
      %p275 = pnand %p273, %p274
      %p276 = pneg %p275
      // Predicated region
      $region9: #{tpu_custom_call.1} parent=5 // pred_check
        _
      $region10: #{tpu_custom_call.1} parent=5 // pred_check_branch
        %278 = sbr.rel (%p275) target = $region12
      $region11: #{tpu_custom_call.1} parent=5 // pred_region
        %s279 = ssub.s32 %s19, 1
        // Predicated region
        $region13: #{tpu_custom_call.1} parent=11 // pred_check
          %p280 = pneg %p92
        $region14: #{tpu_custom_call.1} parent=11 // pred_check_branch
          %282 = sbr.rel (%p280) target = $region16
        $region15: #{tpu_custom_call.1} parent=11 // pred_region
          _
        $region16: #{tpu_custom_call.1} parent=11 // pred_fallthru
          _
        // Predicated region
        $region17: #{tpu_custom_call.1} parent=11 // pred_check
          %p283 = pneg %p113
        $region18: #{tpu_custom_call.1} parent=11 // pred_check_branch
          %285 = sbr.rel (%p283) target = $region20
        $region19: #{tpu_custom_call.1} parent=11 // pred_region
          _
        $region20: #{tpu_custom_call.1} parent=11 // pred_fallthru
          _
        // Predicated region
        $region21: #{tpu_custom_call.1} parent=11 // pred_check
          %p286 = pneg %p134
        $region22: #{tpu_custom_call.1} parent=11 // pred_check_branch
          %288 = sbr.rel (%p286) target = $region24
        $region23: #{tpu_custom_call.1} parent=11 // pred_region
          _
        $region24: #{tpu_custom_call.1} parent=11 // pred_fallthru
          _
        // Predicated region
        $region25: #{tpu_custom_call.1} parent=11 // pred_check
          %p289 = pneg %p155
        $region26: #{tpu_custom_call.1} parent=11 // pred_check_branch
          %291 = sbr.rel (%p289) target = $region28
        $region27: #{tpu_custom_call.1} parent=11 // pred_region
          _
        $region28: #{tpu_custom_call.1} parent=11 // pred_fallthru
          _
        // Predicated region
        $region29: #{tpu_custom_call.1} parent=11 // pred_check
          %p292 = pneg %p176
        $region30: #{tpu_custom_call.1} parent=11 // pred_check_branch
          %294 = sbr.rel (%p292) target = $region32
        $region31: #{tpu_custom_call.1} parent=11 // pred_region
          _
        $region32: #{tpu_custom_call.1} parent=11 // pred_fallthru
          _
        // Predicated region
        $region33: #{tpu_custom_call.1} parent=11 // pred_check
          %p295 = pneg %p197
        $region34: #{tpu_custom_call.1} parent=11 // pred_check_branch
          %297 = sbr.rel (%p295) target = $region36
        $region35: #{tpu_custom_call.1} parent=11 // pred_region
          _
        $region36: #{tpu_custom_call.1} parent=11 // pred_fallthru
          _
        // Predicated region
        $region37: #{tpu_custom_call.1} parent=11 // pred_check
          %p298 = pneg %p218
        $region38: #{tpu_custom_call.1} parent=11 // pred_check_branch
          %300 = sbr.rel (%p298) target = $region40
        $region39: #{tpu_custom_call.1} parent=11 // pred_region
          _
        $region40: #{tpu_custom_call.1} parent=11 // pred_fallthru
          _
        // Predicated region
        $region41: #{tpu_custom_call.1} parent=11 // pred_check
          %p301 = pneg %p239
        $region42: #{tpu_custom_call.1} parent=11 // pred_check_branch
          %303 = sbr.rel (%p301) target = $region44
        $region43: #{tpu_custom_call.1} parent=11 // pred_region
          _
        $region44: #{tpu_custom_call.1} parent=11 // pred_fallthru
          _
      $region12: #{tpu_custom_call.1} parent=5 // pred_fallthru
        _
      %p304 = scmp.lt.s32.totalorder %s19, 2
      // Predicated region
      $region45: #{tpu_custom_call.1} parent=5 // pred_check
        %p305 = pneg %p304
      $region46: #{tpu_custom_call.1} parent=5 // pred_check_branch
        %307 = sbr.rel (%p305) target = $region48
      $region47: #{tpu_custom_call.1} parent=5 // pred_region
        // Predicated region
        $region49: #{tpu_custom_call.1} parent=47 // pred_check
          %p308 = pneg %p39
        $region50: #{tpu_custom_call.1} parent=47 // pred_check_branch
          %310 = sbr.rel (%p308) target = $region52
        $region51: #{tpu_custom_call.1} parent=47 // pred_region
          %p311 = scmp.lt.s32.totalorder %s19, 1
          %s312 = scalar_select %p311, %s19, 1
          %s313 = smul.addr %s312, 8
          %s314 = scalar_lea.vmem %s0, %s313
        $region52: #{tpu_custom_call.1} parent=47 // pred_fallthru
          _
        // Predicated region
        $region53: #{tpu_custom_call.1} parent=47 // pred_check
          %p315 = pneg %p65
        $region54: #{tpu_custom_call.1} parent=47 // pred_check_branch
          %317 = sbr.rel (%p315) target = $region56
        $region55: #{tpu_custom_call.1} parent=47 // pred_region
          %p318 = scmp.lt.s32.totalorder %s19, 1
          %s319 = scalar_select %p318, %s19, 1
          %s320 = scalar_lea.vmem %s1, %s319
        $region56: #{tpu_custom_call.1} parent=47 // pred_fallthru
          _
      $region48: #{tpu_custom_call.1} parent=5 // pred_fallthru
        _
      %p321 = scmp.le.s32.totalorder 1, %s19
      %p322 = scmp.lt.s32.totalorder %s19, 3
      %p323 = pnand %p321, %p322
      %p324 = pneg %p323
      // Predicated region
      $region57: #{tpu_custom_call.1} parent=5 // pred_check
        _
      $region58: #{tpu_custom_call.1} parent=5 // pred_check_branch
        %326 = sbr.rel (%p323) target = $region60
      $region59: #{tpu_custom_call.1} parent=5 // pred_region
        %s327 = ssub.s32 %s19, 1
        %p328 = scmp.lt.s32.totalorder %s24, 1
        %s329 = scalar_select %p328, %s24, 1
        %s330 = smul.addr %s329, 8
        %s331 = scalar_lea.vmem %s0, %s330
        %p332 = pneg %p45
        %p333 = pneg %p42
        %p334 = scmp.lt.s32.totalorder %s24, 1
        %s335 = scalar_select %p334, %s24, 1
        %s336 = scalar_lea.vmem %s1, %s335
        %p337 = pneg %p71
        %p338 = pneg %p68
        %p339 = pneg %p92
        %p340 = pneg %p89
        %p341 = pneg %p113
        %p342 = pneg %p110
        %p343 = pneg %p134
        %p344 = pneg %p131
        %p345 = pneg %p155
        %p346 = pneg %p152
        %p347 = pneg %p176
        %p348 = pneg %p173
        %p349 = pneg %p197
        %p350 = pneg %p194
        %p351 = pneg %p218
        %p352 = pneg %p215
        %p353 = pneg %p239
        %p354 = pneg %p236
        %p355 = pneg %p265
        %p356 = pneg %p262
        %s357 = sand.u32 %s252, 1
        %s358 = scalar_lea.sflag [#allocation3], %s357
        %s359 = sand.u32 %s252, 1
        %s360 = smul.addr %s359, 8
        %s361 = scalar_lea.vmem [#allocation2], %s360
        %p362 = scmp.lt.s32.totalorder %s24, 1
        %s363 = scalar_select %p362, %s24, 1
        %s364 = smul.addr %s363, 8
        %s365 = scalar_lea.vmem %s0, %s364
        %p366 = scmp.lt.s32.totalorder %s24, 1
        %s367 = scalar_select %p366, %s24, 1
        %s368 = scalar_lea.vmem %s1, %s367
        %v370 = vld [vmem:[%s365] sm:$0xff]
        %v371 = vld [vmem:[%s2] sm:$0xff]
        %v372 = vld [vmem:[%s2 + $0x8] sm:$0xff]
        %v373 = vld [vmem:[%s2 + $0x10] sm:$0xff]
        %v374 = vld [vmem:[%s2 + $0x18] sm:$0xff]
        %v375 = vld [vmem:[%s2 + $0x20] sm:$0xff]
        %v376 = vld [vmem:[%s2 + $0x28] sm:$0xff]
        %v377 = vld [vmem:[%s2 + $0x30] sm:$0xff]
        %v378 = vld [vmem:[%s2 + $0x38] sm:$0xff]
        %v379 = vld [vmem:[%s2 + $0x40] sm:$0xff]
        %v380 = vld [vmem:[%s2 + $0x48] sm:$0xff]
        %v381 = vld [vmem:[%s2 + $0x50] sm:$0xff]
        %v382 = vld [vmem:[%s2 + $0x58] sm:$0xff]
        %v383 = vld [vmem:[%s2 + $0x60] sm:$0xff]
        %v384 = vld [vmem:[%s2 + $0x68] sm:$0xff]
        %v385 = vld [vmem:[%s2 + $0x70] sm:$0xff]
        %v386 = vld [vmem:[%s2 + $0x78] sm:$0xff]
        %v387 = vld [vmem:[%s3] sm:$0x1]
        %v388 = vld [vmem:[%s3 + $0x1] sm:$0x1]
        %v389 = vld [vmem:[%s3 + $0x2] sm:$0x1]
        %v390 = vld [vmem:[%s3 + $0x3] sm:$0x1]
        %v395 = vlaneseq
        %v396 = vshrl.u32 %v395, 7
        %v397 = vsub.s32 0, %v396
        %v398 = vrot.slane %v387, %v397
        %v399 = vlaneseq
        %v400 = vshrl.u32 %v399, 7
        %v401 = vsub.s32 0, %v400
        %v402 = vrot.slane %v388, %v401
        %v403 = vlaneseq
        %v404 = vshrl.u32 %v403, 7
        %v405 = vsub.s32 0, %v404
        %v406 = vrot.slane %v389, %v405
        %v407 = vlaneseq
        %v408 = vshrl.u32 %v407, 7
        %v409 = vsub.s32 0, %v408
        %v410 = vrot.slane %v390, %v409
        %vm415 = vcmask 261120
        %v417 = vsel %vm415, %v370, 0
        %419 = vmatprep.subr.mxu0 0.0
        %420 = vmatpush1.msra.mxu0 %v371
        %421 = vmatprep.subr.mxu0 0.0
        %422 = vmatpush1.msra.mxu0 %v372
        %423 = vmatprep.subr.mxu0 0.0
        %424 = vmatpush1.msra.mxu0 %v373
        %425 = vmatprep.subr.mxu0 0.0
        %426 = vmatpush1.msra.mxu0 %v374
        %427 = vmatprep.subr.mxu0 0.0
        %428 = vmatpush1.msra.mxu0 0.0
        %429 = vmatprep.subr.mxu0 0.0
        %430 = vmatpush1.msra.mxu0 0.0
        %431 = vmatprep.subr.mxu0 0.0
        %432 = vmatpush1.msra.mxu0 0.0
        %433 = vmatprep.subr.mxu0 0.0
        %434 = vmatpush1.msra.mxu0 0.0
        %435 = vmatprep.subr.mxu0 0.0
        %436 = vmatpush1.msra.mxu0 0.0
        %437 = vmatprep.subr.mxu0 0.0
        %438 = vmatpush1.msra.mxu0 0.0
        %439 = vmatprep.subr.mxu0 0.0
        %440 = vmatpush1.msra.mxu0 0.0
        %441 = vmatprep.subr.mxu0 0.0
        %442 = vmatpush1.msra.mxu0 0.0
        %443 = vmatprep.subr.mxu0 0.0
        %444 = vmatpush1.msra.mxu0 0.0
        %445 = vmatprep.subr.mxu0 0.0
        %446 = vmatpush1.msra.mxu0 0.0
        %447 = vmatprep.subr.mxu0 0.0
        %448 = vmatpush1.msra.mxu0 0.0
        %449 = vmatprep.subr.mxu0 0.0
        %450 = vmatpush1.msra.mxu0 0.0
        %451 = vmatprep.subr.mxu0 0.0
        %452 = vmatpush1.msra.mxu0 0.0
        %453 = vmatprep.subr.mxu0 0.0
        %454 = vmatpush1.msra.mxu0 0.0
        %455 = vmatprep.subr.mxu0 0.0
        %456 = vmatpush1.msra.mxu0 0.0
        %457 = vmatprep.subr.mxu0 0.0
        %458 = vmatpush1.msra.mxu0 0.0
        %459 = vmatprep.subr.mxu0 0.0
        %460 = vmatpush1.msra.mxu0 0.0
        %461 = vmatprep.subr.mxu0 0.0
        %462 = vmatpush1.msra.mxu0 0.0
        %463 = vmatprep.subr.mxu0 0.0
        %464 = vmatpush1.msra.mxu0 0.0
        %465 = vmatprep.subr.mxu0 0.0
        %466 = vmatpush1.msra.mxu0 0.0
        %467 = vmatprep.subr.mxu0 0.0
        %468 = vmatpush1.msra.mxu0 0.0
        %469 = vmatprep.subr.mxu0 0.0
        %470 = vmatpush1.msra.mxu0 0.0
        %471 = vmatprep.subr.mxu0 0.0
        %472 = vmatpush1.msra.mxu0 0.0
        %473 = vmatprep.subr.mxu0 0.0
        %474 = vmatpush1.msra.mxu0 0.0
        %475 = vmatprep.subr.mxu0 0.0
        %476 = vmatpush1.msra.mxu0 0.0
        %477 = vmatprep.subr.mxu0 0.0
        %478 = vmatpush1.msra.mxu0 0.0
        %479 = vmatprep.subr.mxu0 0.0
        %480 = vmatpush1.msra.mxu0 0.0
        %481 = vmatprep.subr.mxu0 0.0
        %482 = vmatpush1.msra.mxu0 0.0
        %483 = vmatprep.mubr.f32.mxu0 0.0
        %484 = vmatmul.mubr.f32.gmra.mrb[0].mxu0 %v417
        %v485 = vpop.f32.mrb[0].mxu0
        %v486 = vadd.f32 %v398, %v485
        %v487 = vpop.f32.mrb[0].mxu0
        %488 = vdwg.mxu0
        %489 = vmatprep.subr.mxu0 0.0
        %490 = vmatpush1.msra.mxu0 %v375
        %491 = vmatprep.subr.mxu0 0.0
        %492 = vmatpush1.msra.mxu0 %v376
        %493 = vmatprep.subr.mxu0 0.0
        %494 = vmatpush1.msra.mxu0 %v377
        %495 = vmatprep.subr.mxu0 0.0
        %496 = vmatpush1.msra.mxu0 %v378
        %497 = vmatprep.subr.mxu0 0.0
        %498 = vmatpush1.msra.mxu0 0.0
        %499 = vmatprep.subr.mxu0 0.0
        %500 = vmatpush1.msra.mxu0 0.0
        %501 = vmatprep.subr.mxu0 0.0
        %502 = vmatpush1.msra.mxu0 0.0
        %503 = vmatprep.subr.mxu0 0.0
        %504 = vmatpush1.msra.mxu0 0.0
        %505 = vmatprep.subr.mxu0 0.0
        %506 = vmatpush1.msra.mxu0 0.0
        %507 = vmatprep.subr.mxu0 0.0
        %508 = vmatpush1.msra.mxu0 0.0
        %509 = vmatprep.subr.mxu0 0.0
        %510 = vmatpush1.msra.mxu0 0.0
        %511 = vmatprep.subr.mxu0 0.0
        %512 = vmatpush1.msra.mxu0 0.0
        %513 = vmatprep.subr.mxu0 0.0
        %514 = vmatpush1.msra.mxu0 0.0
        %515 = vmatprep.subr.mxu0 0.0
        %516 = vmatpush1.msra.mxu0 0.0
        %517 = vmatprep.subr.mxu0 0.0
        %518 = vmatpush1.msra.mxu0 0.0
        %519 = vmatprep.subr.mxu0 0.0
        %520 = vmatpush1.msra.mxu0 0.0
        %521 = vmatprep.subr.mxu0 0.0
        %522 = vmatpush1.msra.mxu0 0.0
        %523 = vmatprep.subr.mxu0 0.0
        %524 = vmatpush1.msra.mxu0 0.0
        %525 = vmatprep.subr.mxu0 0.0
        %526 = vmatpush1.msra.mxu0 0.0
        %527 = vmatprep.subr.mxu0 0.0
        %528 = vmatpush1.msra.mxu0 0.0
        %529 = vmatprep.subr.mxu0 0.0
        %530 = vmatpush1.msra.mxu0 0.0
        %531 = vmatprep.subr.mxu0 0.0
        %532 = vmatpush1.msra.mxu0 0.0
        %533 = vmatprep.subr.mxu0 0.0
        %534 = vmatpush1.msra.mxu0 0.0
        %535 = vmatprep.subr.mxu0 0.0
        %536 = vmatpush1.msra.mxu0 0.0
        %537 = vmatprep.subr.mxu0 0.0
        %538 = vmatpush1.msra.mxu0 0.0
        %539 = vmatprep.subr.mxu0 0.0
        %540 = vmatpush1.msra.mxu0 0.0
        %541 = vmatprep.subr.mxu0 0.0
        %542 = vmatpush1.msra.mxu0 0.0
        %543 = vmatprep.subr.mxu0 0.0
        %544 = vmatpush1.msra.mxu0 0.0
        %545 = vmatprep.subr.mxu0 0.0
        %546 = vmatpush1.msra.mxu0 0.0
        %547 = vmatprep.subr.mxu0 0.0
        %548 = vmatpush1.msra.mxu0 0.0
        %549 = vmatprep.subr.mxu0 0.0
        %550 = vmatpush1.msra.mxu0 0.0
        %551 = vmatprep.subr.mxu0 0.0
        %552 = vmatpush1.msra.mxu0 0.0
        %553 = vmatprep.mubr.f32.mxu0 0.0
        %554 = vmatmul.mubr.f32.gmra.mrb[0].mxu0 %v417
        %v555 = vpop.f32.mrb[0].mxu0
        %v556 = vadd.f32 %v402, %v555
        %v557 = vpop.f32.mrb[0].mxu0
        %558 = vdwg.mxu0
        %559 = vmatprep.subr.mxu0 0.0
        %560 = vmatpush1.msra.mxu0 %v379
        %561 = vmatprep.subr.mxu0 0.0
        %562 = vmatpush1.msra.mxu0 %v380
        %563 = vmatprep.subr.mxu0 0.0
        %564 = vmatpush1.msra.mxu0 %v381
        %565 = vmatprep.subr.mxu0 0.0
        %566 = vmatpush1.msra.mxu0 %v382
        %567 = vmatprep.subr.mxu0 0.0
        %568 = vmatpush1.msra.mxu0 0.0
        %569 = vmatprep.subr.mxu0 0.0
        %570 = vmatpush1.msra.mxu0 0.0
        %571 = vmatprep.subr.mxu0 0.0
        %572 = vmatpush1.msra.mxu0 0.0
        %573 = vmatprep.subr.mxu0 0.0
        %574 = vmatpush1.msra.mxu0 0.0
        %575 = vmatprep.subr.mxu0 0.0
        %576 = vmatpush1.msra.mxu0 0.0
        %577 = vmatprep.subr.mxu0 0.0
        %578 = vmatpush1.msra.mxu0 0.0
        %579 = vmatprep.subr.mxu0 0.0
        %580 = vmatpush1.msra.mxu0 0.0
        %581 = vmatprep.subr.mxu0 0.0
        %582 = vmatpush1.msra.mxu0 0.0
        %583 = vmatprep.subr.mxu0 0.0
        %584 = vmatpush1.msra.mxu0 0.0
        %585 = vmatprep.subr.mxu0 0.0
        %586 = vmatpush1.msra.mxu0 0.0
        %587 = vmatprep.subr.mxu0 0.0
        %588 = vmatpush1.msra.mxu0 0.0
        %589 = vmatprep.subr.mxu0 0.0
        %590 = vmatpush1.msra.mxu0 0.0
        %591 = vmatprep.subr.mxu0 0.0
        %592 = vmatpush1.msra.mxu0 0.0
        %593 = vmatprep.subr.mxu0 0.0
        %594 = vmatpush1.msra.mxu0 0.0
        %595 = vmatprep.subr.mxu0 0.0
        %596 = vmatpush1.msra.mxu0 0.0
        %597 = vmatprep.subr.mxu0 0.0
        %598 = vmatpush1.msra.mxu0 0.0
        %599 = vmatprep.subr.mxu0 0.0
        %600 = vmatpush1.msra.mxu0 0.0
        %601 = vmatprep.subr.mxu0 0.0
        %602 = vmatpush1.msra.mxu0 0.0
        %603 = vmatprep.subr.mxu0 0.0
        %604 = vmatpush1.msra.mxu0 0.0
        %605 = vmatprep.subr.mxu0 0.0
        %606 = vmatpush1.msra.mxu0 0.0
        %607 = vmatprep.subr.mxu0 0.0
        %608 = vmatpush1.msra.mxu0 0.0
        %609 = vmatprep.subr.mxu0 0.0
        %610 = vmatpush1.msra.mxu0 0.0
        %611 = vmatprep.subr.mxu0 0.0
        %612 = vmatpush1.msra.mxu0 0.0
        %613 = vmatprep.subr.mxu0 0.0
        %614 = vmatpush1.msra.mxu0 0.0
        %615 = vmatprep.subr.mxu0 0.0
        %616 = vmatpush1.msra.mxu0 0.0
        %617 = vmatprep.subr.mxu0 0.0
        %618 = vmatpush1.msra.mxu0 0.0
        %619 = vmatprep.subr.mxu0 0.0
        %620 = vmatpush1.msra.mxu0 0.0
        %621 = vmatprep.subr.mxu0 0.0
        %622 = vmatpush1.msra.mxu0 0.0
        %623 = vmatprep.mubr.f32.mxu0 0.0
        %624 = vmatmul.mubr.f32.gmra.mrb[0].mxu0 %v417
        %v625 = vpop.f32.mrb[0].mxu0
        %v626 = vadd.f32 %v406, %v625
        %v627 = vpop.f32.mrb[0].mxu0
        %628 = vdwg.mxu0
        %629 = vmatprep.subr.mxu0 0.0
        %630 = vmatpush1.msra.mxu0 %v383
        %631 = vmatprep.subr.mxu0 0.0
        %632 = vmatpush1.msra.mxu0 %v384
        %633 = vmatprep.subr.mxu0 0.0
        %634 = vmatpush1.msra.mxu0 %v385
        %635 = vmatprep.subr.mxu0 0.0
        %636 = vmatpush1.msra.mxu0 %v386
        %637 = vmatprep.subr.mxu0 0.0
        %638 = vmatpush1.msra.mxu0 0.0
        %639 = vmatprep.subr.mxu0 0.0
        %640 = vmatpush1.msra.mxu0 0.0
        %641 = vmatprep.subr.mxu0 0.0
        %642 = vmatpush1.msra.mxu0 0.0
        %643 = vmatprep.subr.mxu0 0.0
        %644 = vmatpush1.msra.mxu0 0.0
        %645 = vmatprep.subr.mxu0 0.0
        %646 = vmatpush1.msra.mxu0 0.0
        %647 = vmatprep.subr.mxu0 0.0
        %648 = vmatpush1.msra.mxu0 0.0
        %649 = vmatprep.subr.mxu0 0.0
        %650 = vmatpush1.msra.mxu0 0.0
        %651 = vmatprep.subr.mxu0 0.0
        %652 = vmatpush1.msra.mxu0 0.0
        %653 = vmatprep.subr.mxu0 0.0
        %654 = vmatpush1.msra.mxu0 0.0
        %655 = vmatprep.subr.mxu0 0.0
        %656 = vmatpush1.msra.mxu0 0.0
        %657 = vmatprep.subr.mxu0 0.0
        %658 = vmatpush1.msra.mxu0 0.0
        %659 = vmatprep.subr.mxu0 0.0
        %660 = vmatpush1.msra.mxu0 0.0
        %661 = vmatprep.subr.mxu0 0.0
        %662 = vmatpush1.msra.mxu0 0.0
        %663 = vmatprep.subr.mxu0 0.0
        %664 = vmatpush1.msra.mxu0 0.0
        %665 = vmatprep.subr.mxu0 0.0
        %666 = vmatpush1.msra.mxu0 0.0
        %667 = vmatprep.subr.mxu0 0.0
        %668 = vmatpush1.msra.mxu0 0.0
        %669 = vmatprep.subr.mxu0 0.0
        %670 = vmatpush1.msra.mxu0 0.0
        %671 = vmatprep.subr.mxu0 0.0
        %672 = vmatpush1.msra.mxu0 0.0
        %673 = vmatprep.subr.mxu0 0.0
        %674 = vmatpush1.msra.mxu0 0.0
        %675 = vmatprep.subr.mxu0 0.0
        %676 = vmatpush1.msra.mxu0 0.0
        %677 = vmatprep.subr.mxu0 0.0
        %678 = vmatpush1.msra.mxu0 0.0
        %679 = vmatprep.subr.mxu0 0.0
        %680 = vmatpush1.msra.mxu0 0.0
        %681 = vmatprep.subr.mxu0 0.0
        %682 = vmatpush1.msra.mxu0 0.0
        %683 = vmatprep.subr.mxu0 0.0
        %684 = vmatpush1.msra.mxu0 0.0
        %685 = vmatprep.subr.mxu0 0.0
        %686 = vmatpush1.msra.mxu0 0.0
        %687 = vmatprep.subr.mxu0 0.0
        %688 = vmatpush1.msra.mxu0 0.0
        %689 = vmatprep.subr.mxu0 0.0
        %690 = vmatpush1.msra.mxu0 0.0
        %691 = vmatprep.subr.mxu0 0.0
        %692 = vmatpush1.msra.mxu0 0.0
        %693 = vmatprep.mubr.f32.mxu0 0.0
        %694 = vmatmul.mubr.f32.gmra.mrb[0].mxu0 %v417
        %v695 = vpop.f32.mrb[0].mxu0
        %v696 = vadd.f32 %v410, %v695
        %v697 = vpop.f32.mrb[0].mxu0
        %698 = vdwg.mxu0
        %v699 = vpack.c.bf16 %v486, %v486
        %v700 = vpack.c.bf16 %v556, %v556
        %v701 = vpack.c.bf16 %v626, %v626
        %v702 = vpack.c.bf16 %v696, %v696
        %v703 = vld [vmem:[%s368] sm:$0x1]
        %v705 = vlaneseq
        %v706 = vshrl.u32 %v705, 7
        %v707 = vsub.s32 0, %v706
        %v708 = vrot.slane %v703, %v707
        %711 = vrot.lane.b32.xlu0 %v699, 120
        %v712 = vpop.permute.xlu0 %711
        %vm713 = vcmask 64512
        %v715 = vsel %vm713, %v699, 0
        %v718 = vsel %vm713, %v712, 0
        %720 = vmatprep.subr.bf16.mxu0 0
        %721 = vmatpush1.bf16.xpose.msra.mxu0 %v718
        %722 = vmatprep.subr.bf16.mxu0 0
        %723 = vmatpush1.bf16.xpose.msra.mxu0 0
        %724 = vmatprep.subr.bf16.mxu0 0
        %725 = vmatpush1.bf16.xpose.msra.mxu0 0
        %726 = vmatprep.subr.bf16.mxu0 0
        %727 = vmatpush1.bf16.xpose.msra.mxu0 0
        %728 = vmatprep.subr.bf16.mxu0 0
        %729 = vmatpush1.bf16.xpose.msra.mxu0 0
        %730 = vmatprep.subr.bf16.mxu0 0
        %731 = vmatpush1.bf16.xpose.msra.mxu0 0
        %732 = vmatprep.subr.bf16.mxu0 0
        %733 = vmatpush1.bf16.xpose.msra.mxu0 0
        %734 = vmatprep.subr.bf16.mxu0 0
        %735 = vmatpush1.bf16.xpose.msra.mxu0 0
        %736 = vmatprep.subr.bf16.mxu0 0
        %737 = vmatpush1.bf16.xpose.msra.mxu0 0
        %738 = vmatprep.subr.bf16.mxu0 0
        %739 = vmatpush1.bf16.xpose.msra.mxu0 0
        %740 = vmatprep.subr.bf16.mxu0 0
        %741 = vmatpush1.bf16.xpose.msra.mxu0 0
        %742 = vmatprep.subr.bf16.mxu0 0
        %743 = vmatpush1.bf16.xpose.msra.mxu0 0
        %744 = vmatprep.subr.bf16.mxu0 0
        %745 = vmatpush1.bf16.xpose.msra.mxu0 0
        %746 = vmatprep.subr.bf16.mxu0 0
        %747 = vmatpush1.bf16.xpose.msra.mxu0 0
        %748 = vmatprep.subr.bf16.mxu0 0
        %749 = vmatpush1.bf16.xpose.msra.mxu0 0
        %750 = vmatprep.subr.bf16.mxu0 0
        %751 = vmatpush1.bf16.xpose.msra.mxu0 0
        %752 = vmatprep.mubr.bf16.mxu0 0
        %753 = vmatmul.mubr.bf16.gmra.mrb[0].mxu0 %v715
        %v754 = vpop.f32.mrb[0].mxu0
        %v755 = vadd.f32 %v708, %v754
        %v756 = vpop.f32.mrb[0].mxu0
        %v757 = vpop.f32.mrb[0].mxu0
        %v758 = vpop.f32.mrb[0].mxu0
        %759 = vdwg.mxu0
        %761 = vrot.lane.b32.xlu0 %v700, 120
        %v762 = vpop.permute.xlu0 %761
        %v764 = vsel %vm713, %v700, 0
        %v767 = vsel %vm713, %v762, 0
        %769 = vmatprep.subr.bf16.mxu0 0
        %770 = vmatpush1.bf16.xpose.msra.mxu0 %v767
        %771 = vmatprep.subr.bf16.mxu0 0
        %772 = vmatpush1.bf16.xpose.msra.mxu0 0
        %773 = vmatprep.subr.bf16.mxu0 0
        %774 = vmatpush1.bf16.xpose.msra.mxu0 0
        %775 = vmatprep.subr.bf16.mxu0 0
        %776 = vmatpush1.bf16.xpose.msra.mxu0 0
        %777 = vmatprep.subr.bf16.mxu0 0
        %778 = vmatpush1.bf16.xpose.msra.mxu0 0
        %779 = vmatprep.subr.bf16.mxu0 0
        %780 = vmatpush1.bf16.xpose.msra.mxu0 0
        %781 = vmatprep.subr.bf16.mxu0 0
        %782 = vmatpush1.bf16.xpose.msra.mxu0 0
        %783 = vmatprep.subr.bf16.mxu0 0
        %784 = vmatpush1.bf16.xpose.msra.mxu0 0
        %785 = vmatprep.subr.bf16.mxu0 0
        %786 = vmatpush1.bf16.xpose.msra.mxu0 0
        %787 = vmatprep.subr.bf16.mxu0 0
        %788 = vmatpush1.bf16.xpose.msra.mxu0 0
        %789 = vmatprep.subr.bf16.mxu0 0
        %790 = vmatpush1.bf16.xpose.msra.mxu0 0
        %791 = vmatprep.subr.bf16.mxu0 0
        %792 = vmatpush1.bf16.xpose.msra.mxu0 0
        %793 = vmatprep.subr.bf16.mxu0 0
        %794 = vmatpush1.bf16.xpose.msra.mxu0 0
        %795 = vmatprep.subr.bf16.mxu0 0
        %796 = vmatpush1.bf16.xpose.msra.mxu0 0
        %797 = vmatprep.subr.bf16.mxu0 0
        %798 = vmatpush1.bf16.xpose.msra.mxu0 0
        %799 = vmatprep.subr.bf16.mxu0 0
        %800 = vmatpush1.bf16.xpose.msra.mxu0 0
        %801 = vmatprep.mubr.bf16.mxu0 0
        %802 = vmatmul.mubr.bf16.gmra.mrb[0].mxu0 %v764
        %v803 = vpop.f32.mrb[0].mxu0
        %v804 = vadd.f32 %v708, %v803
        %v805 = vpop.f32.mrb[0].mxu0
        %v806 = vpop.f32.mrb[0].mxu0
        %v807 = vpop.f32.mrb[0].mxu0
        %808 = vdwg.mxu0
        %810 = vrot.lane.b32.xlu0 %v701, 120
        %v811 = vpop.permute.xlu0 %810
        %v813 = vsel %vm713, %v701, 0
        %v816 = vsel %vm713, %v811, 0
        %818 = vmatprep.subr.bf16.mxu0 0
        %819 = vmatpush1.bf16.xpose.msra.mxu0 %v816
        %820 = vmatprep.subr.bf16.mxu0 0
        %821 = vmatpush1.bf16.xpose.msra.mxu0 0
        %822 = vmatprep.subr.bf16.mxu0 0
        %823 = vmatpush1.bf16.xpose.msra.mxu0 0
        %824 = vmatprep.subr.bf16.mxu0 0
        %825 = vmatpush1.bf16.xpose.msra.mxu0 0
        %826 = vmatprep.subr.bf16.mxu0 0
        %827 = vmatpush1.bf16.xpose.msra.mxu0 0
        %828 = vmatprep.subr.bf16.mxu0 0
        %829 = vmatpush1.bf16.xpose.msra.mxu0 0
        %830 = vmatprep.subr.bf16.mxu0 0
        %831 = vmatpush1.bf16.xpose.msra.mxu0 0
        %832 = vmatprep.subr.bf16.mxu0 0
        %833 = vmatpush1.bf16.xpose.msra.mxu0 0
        %834 = vmatprep.subr.bf16.mxu0 0
        %835 = vmatpush1.bf16.xpose.msra.mxu0 0
        %836 = vmatprep.subr.bf16.mxu0 0
        %837 = vmatpush1.bf16.xpose.msra.mxu0 0
        %838 = vmatprep.subr.bf16.mxu0 0
        %839 = vmatpush1.bf16.xpose.msra.mxu0 0
        %840 = vmatprep.subr.bf16.mxu0 0
        %841 = vmatpush1.bf16.xpose.msra.mxu0 0
        %842 = vmatprep.subr.bf16.mxu0 0
        %843 = vmatpush1.bf16.xpose.msra.mxu0 0
        %844 = vmatprep.subr.bf16.mxu0 0
        %845 = vmatpush1.bf16.xpose.msra.mxu0 0
        %846 = vmatprep.subr.bf16.mxu0 0
        %847 = vmatpush1.bf16.xpose.msra.mxu0 0
        %848 = vmatprep.subr.bf16.mxu0 0
        %849 = vmatpush1.bf16.xpose.msra.mxu0 0
        %850 = vmatprep.mubr.bf16.mxu0 0
        %851 = vmatmul.mubr.bf16.gmra.mrb[0].mxu0 %v813
        %v852 = vpop.f32.mrb[0].mxu0
        %v853 = vadd.f32 %v708, %v852
        %v854 = vpop.f32.mrb[0].mxu0
        %v855 = vpop.f32.mrb[0].mxu0
        %v856 = vpop.f32.mrb[0].mxu0
        %857 = vdwg.mxu0
        %859 = vrot.lane.b32.xlu0 %v702, 120
        %v860 = vpop.permute.xlu0 %859
        %v862 = vsel %vm713, %v702, 0
        %v865 = vsel %vm713, %v860, 0
        %867 = vmatprep.subr.bf16.mxu0 0
        %868 = vmatpush1.bf16.xpose.msra.mxu0 %v865
        %869 = vmatprep.subr.bf16.mxu0 0
        %870 = vmatpush1.bf16.xpose.msra.mxu0 0
        %871 = vmatprep.subr.bf16.mxu0 0
        %872 = vmatpush1.bf16.xpose.msra.mxu0 0
        %873 = vmatprep.subr.bf16.mxu0 0
        %874 = vmatpush1.bf16.xpose.msra.mxu0 0
        %875 = vmatprep.subr.bf16.mxu0 0
        %876 = vmatpush1.bf16.xpose.msra.mxu0 0
        %877 = vmatprep.subr.bf16.mxu0 0
        %878 = vmatpush1.bf16.xpose.msra.mxu0 0
        %879 = vmatprep.subr.bf16.mxu0 0
        %880 = vmatpush1.bf16.xpose.msra.mxu0 0
        %881 = vmatprep.subr.bf16.mxu0 0
        %882 = vmatpush1.bf16.xpose.msra.mxu0 0
        %883 = vmatprep.subr.bf16.mxu0 0
        %884 = vmatpush1.bf16.xpose.msra.mxu0 0
        %885 = vmatprep.subr.bf16.mxu0 0
        %886 = vmatpush1.bf16.xpose.msra.mxu0 0
        %887 = vmatprep.subr.bf16.mxu0 0
        %888 = vmatpush1.bf16.xpose.msra.mxu0 0
        %889 = vmatprep.subr.bf16.mxu0 0
        %890 = vmatpush1.bf16.xpose.msra.mxu0 0
        %891 = vmatprep.subr.bf16.mxu0 0
        %892 = vmatpush1.bf16.xpose.msra.mxu0 0
        %893 = vmatprep.subr.bf16.mxu0 0
        %894 = vmatpush1.bf16.xpose.msra.mxu0 0
        %895 = vmatprep.subr.bf16.mxu0 0
        %896 = vmatpush1.bf16.xpose.msra.mxu0 0
        %897 = vmatprep.subr.bf16.mxu0 0
        %898 = vmatpush1.bf16.xpose.msra.mxu0 0
        %899 = vmatprep.mubr.bf16.mxu0 0
        %900 = vmatmul.mubr.bf16.gmra.mrb[0].mxu0 %v862
        %v901 = vpop.f32.mrb[0].mxu0
        %v902 = vadd.f32 %v708, %v901
        %v903 = vpop.f32.mrb[0].mxu0
        %v904 = vpop.f32.mrb[0].mxu0
        %v905 = vpop.f32.mrb[0].mxu0
        %906 = vdwg.mxu0
        %v907 = vsel %vm713, %v755, -inf
        %908 = vmax.xlane.f32.xlu0 %v907
        %v909 = vpop.xlane.xlu0 %908
        %v910 = vsel %vm713, %v804, -inf
        %911 = vmax.xlane.f32.xlu0 %v910
        %v912 = vpop.xlane.xlu0 %911
        %v913 = vsel %vm713, %v853, -inf
        %914 = vmax.xlane.f32.xlu0 %v913
        %v915 = vpop.xlane.xlu0 %914
        %v916 = vsel %vm713, %v902, -inf
        %917 = vmax.xlane.f32.xlu0 %v916
        %v918 = vpop.xlane.xlu0 %917
        %v919 = vsub.f32 %v755, %v909
        %v920 = vsub.f32 %v804, %v912
        %v921 = vsub.f32 %v853, %v915
        %v922 = vsub.f32 %v902, %v918
        %v923 = vmul.f32 %v919, 1.442695
        %v924 = vpow.pop %v923
        %v925 = vmul.f32 %v920, 1.442695
        %v926 = vpow.pop %v925
        %v927 = vmul.f32 %v921, 1.442695
        %v928 = vpow.pop %v927
        %v929 = vmul.f32 %v922, 1.442695
        %v930 = vpow.pop %v929
        %v931 = vsel %vm713, %v924, 0.0
        %932 = vadd.xlane.f32.xlu0 %v931
        %v933 = vpop.xlane.xlu0 %932
        %v934 = vsel %vm713, %v926, 0.0
        %935 = vadd.xlane.f32.xlu0 %v934
        %v936 = vpop.xlane.xlu0 %935
        %v937 = vsel %vm713, %v928, 0.0
        %938 = vadd.xlane.f32.xlu0 %v937
        %v939 = vpop.xlane.xlu0 %938
        %v940 = vsel %vm713, %v930, 0.0
        %941 = vadd.xlane.f32.xlu0 %v940
        %v942 = vpop.xlane.xlu0 %941
        %v943 = vrcp.pop %v933
        %v944 = vrcp.pop %v936
        %v945 = vrcp.pop %v939
        %v946 = vrcp.pop %v942
        %v947 = vmul.f32 %v924, %v943
        %v948 = vmul.f32 %v926, %v944
        %v949 = vmul.f32 %v928, %v945
        %v950 = vmul.f32 %v930, %v946
        %v951 = vpack.c.bf16 %v947, %v947
        %v952 = vpack.c.bf16 %v948, %v948
        %v953 = vpack.c.bf16 %v949, %v949
        %v954 = vpack.c.bf16 %v950, %v950
        %955 = vrot.lane.b32.xlu0 %v699, 112
        %v956 = vpop.permute.xlu0 %955
        %v958 = vsel %vm713, %v951, 0
        %vm960 = vcmask 1043456
        %v962 = vsel %vm960, %v956, 0
        %964 = vmatprep.subr.bf16.mxu0 0
        %965 = vmatpush1.bf16.msra.mxu0 %v962
        %966 = vmatprep.subr.bf16.mxu0 0
        %967 = vmatpush1.bf16.msra.mxu0 0
        %968 = vmatprep.subr.bf16.mxu0 0
        %969 = vmatpush1.bf16.msra.mxu0 0
        %970 = vmatprep.subr.bf16.mxu0 0
        %971 = vmatpush1.bf16.msra.mxu0 0
        %972 = vmatprep.subr.bf16.mxu0 0
        %973 = vmatpush1.bf16.msra.mxu0 0
        %974 = vmatprep.subr.bf16.mxu0 0
        %975 = vmatpush1.bf16.msra.mxu0 0
        %976 = vmatprep.subr.bf16.mxu0 0
        %977 = vmatpush1.bf16.msra.mxu0 0
        %978 = vmatprep.subr.bf16.mxu0 0
        %979 = vmatpush1.bf16.msra.mxu0 0
        %980 = vmatprep.subr.bf16.mxu0 0
        %981 = vmatpush1.bf16.msra.mxu0 0
        %982 = vmatprep.subr.bf16.mxu0 0
        %983 = vmatpush1.bf16.msra.mxu0 0
        %984 = vmatprep.subr.bf16.mxu0 0
        %985 = vmatpush1.bf16.msra.mxu0 0
        %986 = vmatprep.subr.bf16.mxu0 0
        %987 = vmatpush1.bf16.msra.mxu0 0
        %988 = vmatprep.subr.bf16.mxu0 0
        %989 = vmatpush1.bf16.msra.mxu0 0
        %990 = vmatprep.subr.bf16.mxu0 0
        %991 = vmatpush1.bf16.msra.mxu0 0
        %992 = vmatprep.subr.bf16.mxu0 0
        %993 = vmatpush1.bf16.msra.mxu0 0
        %994 = vmatprep.subr.bf16.mxu0 0
        %995 = vmatpush1.bf16.msra.mxu0 0
        %996 = vmatprep.mubr.bf16.mxu0 0
        %997 = vmatmul.mubr.bf16.gmra.mrb[0].mxu0 %v958
        %v998 = vpop.f32.mrb[0].mxu0
        %v999 = vadd.f32 0.0, %v998
        %v1000 = vpop.f32.mrb[0].mxu0
        %v1001 = vpop.f32.mrb[0].mxu0
        %v1002 = vpop.f32.mrb[0].mxu0
        %1003 = vdwg.mxu0
        %1004 = vrot.lane.b32.xlu0 %v700, 112
        %v1005 = vpop.permute.xlu0 %1004
        %v1007 = vsel %vm713, %v952, 0
        %v1010 = vsel %vm960, %v1005, 0
        %1012 = vmatprep.subr.bf16.mxu0 0
        %1013 = vmatpush1.bf16.msra.mxu0 %v1010
        %1014 = vmatprep.subr.bf16.mxu0 0
        %1015 = vmatpush1.bf16.msra.mxu0 0
        %1016 = vmatprep.subr.bf16.mxu0 0
        %1017 = vmatpush1.bf16.msra.mxu0 0
        %1018 = vmatprep.subr.bf16.mxu0 0
        %1019 = vmatpush1.bf16.msra.mxu0 0
        %1020 = vmatprep.subr.bf16.mxu0 0
        %1021 = vmatpush1.bf16.msra.mxu0 0
        %1022 = vmatprep.subr.bf16.mxu0 0
        %1023 = vmatpush1.bf16.msra.mxu0 0
        %1024 = vmatprep.subr.bf16.mxu0 0
        %1025 = vmatpush1.bf16.msra.mxu0 0
        %1026 = vmatprep.subr.bf16.mxu0 0
        %1027 = vmatpush1.bf16.msra.mxu0 0
        %1028 = vmatprep.subr.bf16.mxu0 0
        %1029 = vmatpush1.bf16.msra.mxu0 0
        %1030 = vmatprep.subr.bf16.mxu0 0
        %1031 = vmatpush1.bf16.msra.mxu0 0
        %1032 = vmatprep.subr.bf16.mxu0 0
        %1033 = vmatpush1.bf16.msra.mxu0 0
        %1034 = vmatprep.subr.bf16.mxu0 0
        %1035 = vmatpush1.bf16.msra.mxu0 0
        %1036 = vmatprep.subr.bf16.mxu0 0
        %1037 = vmatpush1.bf16.msra.mxu0 0
        %1038 = vmatprep.subr.bf16.mxu0 0
        %1039 = vmatpush1.bf16.msra.mxu0 0
        %1040 = vmatprep.subr.bf16.mxu0 0
        %1041 = vmatpush1.bf16.msra.mxu0 0
        %1042 = vmatprep.subr.bf16.mxu0 0
        %1043 = vmatpush1.bf16.msra.mxu0 0
        %1044 = vmatprep.mubr.bf16.mxu0 0
        %1045 = vmatmul.mubr.bf16.gmra.mrb[0].mxu0 %v1007
        %v1046 = vpop.f32.mrb[0].mxu0
        %v1047 = vadd.f32 0.0, %v1046
        %v1048 = vpop.f32.mrb[0].mxu0
        %v1049 = vpop.f32.mrb[0].mxu0
        %v1050 = vpop.f32.mrb[0].mxu0
        %1051 = vdwg.mxu0
        %1052 = vrot.lane.b32.xlu0 %v701, 112
        %v1053 = vpop.permute.xlu0 %1052
        %v1055 = vsel %vm713, %v953, 0
        %v1058 = vsel %vm960, %v1053, 0
        %1060 = vmatprep.subr.bf16.mxu0 0
        %1061 = vmatpush1.bf16.msra.mxu0 %v1058
        %1062 = vmatprep.subr.bf16.mxu0 0
        %1063 = vmatpush1.bf16.msra.mxu0 0
        %1064 = vmatprep.subr.bf16.mxu0 0
        %1065 = vmatpush1.bf16.msra.mxu0 0
        %1066 = vmatprep.subr.bf16.mxu0 0
        %1067 = vmatpush1.bf16.msra.mxu0 0
        %1068 = vmatprep.subr.bf16.mxu0 0
        %1069 = vmatpush1.bf16.msra.mxu0 0
        %1070 = vmatprep.subr.bf16.mxu0 0
        %1071 = vmatpush1.bf16.msra.mxu0 0
        %1072 = vmatprep.subr.bf16.mxu0 0
        %1073 = vmatpush1.bf16.msra.mxu0 0
        %1074 = vmatprep.subr.bf16.mxu0 0
        %1075 = vmatpush1.bf16.msra.mxu0 0
        %1076 = vmatprep.subr.bf16.mxu0 0
        %1077 = vmatpush1.bf16.msra.mxu0 0
        %1078 = vmatprep.subr.bf16.mxu0 0
        %1079 = vmatpush1.bf16.msra.mxu0 0
        %1080 = vmatprep.subr.bf16.mxu0 0
        %1081 = vmatpush1.bf16.msra.mxu0 0
        %1082 = vmatprep.subr.bf16.mxu0 0
        %1083 = vmatpush1.bf16.msra.mxu0 0
        %1084 = vmatprep.subr.bf16.mxu0 0
        %1085 = vmatpush1.bf16.msra.mxu0 0
        %1086 = vmatprep.subr.bf16.mxu0 0
        %1087 = vmatpush1.bf16.msra.mxu0 0
        %1088 = vmatprep.subr.bf16.mxu0 0
        %1089 = vmatpush1.bf16.msra.mxu0 0
        %1090 = vmatprep.subr.bf16.mxu0 0
        %1091 = vmatpush1.bf16.msra.mxu0 0
        %1092 = vmatprep.mubr.bf16.mxu0 0
        %1093 = vmatmul.mubr.bf16.gmra.mrb[0].mxu0 %v1055
        %v1094 = vpop.f32.mrb[0].mxu0
        %v1095 = vadd.f32 0.0, %v1094
        %v1096 = vpop.f32.mrb[0].mxu0
        %v1097 = vpop.f32.mrb[0].mxu0
        %v1098 = vpop.f32.mrb[0].mxu0
        %1099 = vdwg.mxu0
        %1100 = vrot.lane.b32.xlu0 %v702, 112
        %v1101 = vpop.permute.xlu0 %1100
        %v1103 = vsel %vm713, %v954, 0
        %v1106 = vsel %vm960, %v1101, 0
        %1108 = vmatprep.subr.bf16.mxu0 0
        %1109 = vmatpush1.bf16.msra.mxu0 %v1106
        %1110 = vmatprep.subr.bf16.mxu0 0
        %1111 = vmatpush1.bf16.msra.mxu0 0
        %1112 = vmatprep.subr.bf16.mxu0 0
        %1113 = vmatpush1.bf16.msra.mxu0 0
        %1114 = vmatprep.subr.bf16.mxu0 0
        %1115 = vmatpush1.bf16.msra.mxu0 0
        %1116 = vmatprep.subr.bf16.mxu0 0
        %1117 = vmatpush1.bf16.msra.mxu0 0
        %1118 = vmatprep.subr.bf16.mxu0 0
        %1119 = vmatpush1.bf16.msra.mxu0 0
        %1120 = vmatprep.subr.bf16.mxu0 0
        %1121 = vmatpush1.bf16.msra.mxu0 0
        %1122 = vmatprep.subr.bf16.mxu0 0
        %1123 = vmatpush1.bf16.msra.mxu0 0
        %1124 = vmatprep.subr.bf16.mxu0 0
        %1125 = vmatpush1.bf16.msra.mxu0 0
        %1126 = vmatprep.subr.bf16.mxu0 0
        %1127 = vmatpush1.bf16.msra.mxu0 0
        %1128 = vmatprep.subr.bf16.mxu0 0
        %1129 = vmatpush1.bf16.msra.mxu0 0
        %1130 = vmatprep.subr.bf16.mxu0 0
        %1131 = vmatpush1.bf16.msra.mxu0 0
        %1132 = vmatprep.subr.bf16.mxu0 0
        %1133 = vmatpush1.bf16.msra.mxu0 0
        %1134 = vmatprep.subr.bf16.mxu0 0
        %1135 = vmatpush1.bf16.msra.mxu0 0
        %1136 = vmatprep.subr.bf16.mxu0 0
        %1137 = vmatpush1.bf16.msra.mxu0 0
        %1138 = vmatprep.subr.bf16.mxu0 0
        %1139 = vmatpush1.bf16.msra.mxu0 0
        %1140 = vmatprep.mubr.bf16.mxu0 0
        %1141 = vmatmul.mubr.bf16.gmra.mrb[0].mxu0 %v1103
        %v1142 = vpop.f32.mrb[0].mxu0
        %v1143 = vadd.f32 0.0, %v1142
        %v1144 = vpop.f32.mrb[0].mxu0
        %v1145 = vpop.f32.mrb[0].mxu0
        %v1146 = vpop.f32.mrb[0].mxu0
        %1147 = vdwg.mxu0
        %v1148 = vld [vmem:[%s4] sm:$0xff]
        %v1149 = vld [vmem:[%s4 + $0x8] sm:$0xff]
        %v1150 = vld [vmem:[%s4 + $0x10] sm:$0xff]
        %v1151 = vld [vmem:[%s4 + $0x18] sm:$0xff]
        %v1153 = vsel %vm713, %v999, 0
        %1155 = vmatprep.subr.mxu0 0.0
        %1156 = vmatpush1.msra.mxu0 %v1148
        %1157 = vmatprep.subr.mxu0 0.0
        %1158 = vmatpush1.msra.mxu0 0.0
        %1159 = vmatprep.subr.mxu0 0.0
        %1160 = vmatpush1.msra.mxu0 0.0
        %1161 = vmatprep.subr.mxu0 0.0
        %1162 = vmatpush1.msra.mxu0 0.0
        %1163 = vmatprep.subr.mxu0 0.0
        %1164 = vmatpush1.msra.mxu0 0.0
        %1165 = vmatprep.subr.mxu0 0.0
        %1166 = vmatpush1.msra.mxu0 0.0
        %1167 = vmatprep.subr.mxu0 0.0
        %1168 = vmatpush1.msra.mxu0 0.0
        %1169 = vmatprep.subr.mxu0 0.0
        %1170 = vmatpush1.msra.mxu0 0.0
        %1171 = vmatprep.subr.mxu0 0.0
        %1172 = vmatpush1.msra.mxu0 0.0
        %1173 = vmatprep.subr.mxu0 0.0
        %1174 = vmatpush1.msra.mxu0 0.0
        %1175 = vmatprep.subr.mxu0 0.0
        %1176 = vmatpush1.msra.mxu0 0.0
        %1177 = vmatprep.subr.mxu0 0.0
        %1178 = vmatpush1.msra.mxu0 0.0
        %1179 = vmatprep.subr.mxu0 0.0
        %1180 = vmatpush1.msra.mxu0 0.0
        %1181 = vmatprep.subr.mxu0 0.0
        %1182 = vmatpush1.msra.mxu0 0.0
        %1183 = vmatprep.subr.mxu0 0.0
        %1184 = vmatpush1.msra.mxu0 0.0
        %1185 = vmatprep.subr.mxu0 0.0
        %1186 = vmatpush1.msra.mxu0 0.0
        %1187 = vmatprep.subr.mxu0 0.0
        %1188 = vmatpush1.msra.mxu0 0.0
        %1189 = vmatprep.subr.mxu0 0.0
        %1190 = vmatpush1.msra.mxu0 0.0
        %1191 = vmatprep.subr.mxu0 0.0
        %1192 = vmatpush1.msra.mxu0 0.0
        %1193 = vmatprep.subr.mxu0 0.0
        %1194 = vmatpush1.msra.mxu0 0.0
        %1195 = vmatprep.subr.mxu0 0.0
        %1196 = vmatpush1.msra.mxu0 0.0
        %1197 = vmatprep.subr.mxu0 0.0
        %1198 = vmatpush1.msra.mxu0 0.0
        %1199 = vmatprep.subr.mxu0 0.0
        %1200 = vmatpush1.msra.mxu0 0.0
        %1201 = vmatprep.subr.mxu0 0.0
        %1202 = vmatpush1.msra.mxu0 0.0
        %1203 = vmatprep.subr.mxu0 0.0
        %1204 = vmatpush1.msra.mxu0 0.0
        %1205 = vmatprep.subr.mxu0 0.0
        %1206 = vmatpush1.msra.mxu0 0.0
        %1207 = vmatprep.subr.mxu0 0.0
        %1208 = vmatpush1.msra.mxu0 0.0
        %1209 = vmatprep.subr.mxu0 0.0
        %1210 = vmatpush1.msra.mxu0 0.0
        %1211 = vmatprep.subr.mxu0 0.0
        %1212 = vmatpush1.msra.mxu0 0.0
        %1213 = vmatprep.subr.mxu0 0.0
        %1214 = vmatpush1.msra.mxu0 0.0
        %1215 = vmatprep.subr.mxu0 0.0
        %1216 = vmatpush1.msra.mxu0 0.0
        %1217 = vmatprep.subr.mxu0 0.0
        %1218 = vmatpush1.msra.mxu0 0.0
        %1219 = vmatprep.mubr.f32.mxu0 0.0
        %1220 = vmatmul.mubr.f32.gmra.mrb[0].mxu0 %v1153
        %v1221 = vpop.f32.mrb[0].mxu0
        %v1222 = vadd.f32 0.0, %v1221
        %v1223 = vpop.f32.mrb[0].mxu0
        %1224 = vdwg.mxu0
        %v1226 = vsel %vm713, %v1047, 0
        %1228 = vmatprep.subr.mxu0 0.0
        %1229 = vmatpush1.msra.mxu0 %v1149
        %1230 = vmatprep.subr.mxu0 0.0
        %1231 = vmatpush1.msra.mxu0 0.0
        %1232 = vmatprep.subr.mxu0 0.0
        %1233 = vmatpush1.msra.mxu0 0.0
        %1234 = vmatprep.subr.mxu0 0.0
        %1235 = vmatpush1.msra.mxu0 0.0
        %1236 = vmatprep.subr.mxu0 0.0
        %1237 = vmatpush1.msra.mxu0 0.0
        %1238 = vmatprep.subr.mxu0 0.0
        %1239 = vmatpush1.msra.mxu0 0.0
        %1240 = vmatprep.subr.mxu0 0.0
        %1241 = vmatpush1.msra.mxu0 0.0
        %1242 = vmatprep.subr.mxu0 0.0
        %1243 = vmatpush1.msra.mxu0 0.0
        %1244 = vmatprep.subr.mxu0 0.0
        %1245 = vmatpush1.msra.mxu0 0.0
        %1246 = vmatprep.subr.mxu0 0.0
        %1247 = vmatpush1.msra.mxu0 0.0
        %1248 = vmatprep.subr.mxu0 0.0
        %1249 = vmatpush1.msra.mxu0 0.0
        %1250 = vmatprep.subr.mxu0 0.0
        %1251 = vmatpush1.msra.mxu0 0.0
        %1252 = vmatprep.subr.mxu0 0.0
        %1253 = vmatpush1.msra.mxu0 0.0
        %1254 = vmatprep.subr.mxu0 0.0
        %1255 = vmatpush1.msra.mxu0 0.0
        %1256 = vmatprep.subr.mxu0 0.0
        %1257 = vmatpush1.msra.mxu0 0.0
        %1258 = vmatprep.subr.mxu0 0.0
        %1259 = vmatpush1.msra.mxu0 0.0
        %1260 = vmatprep.subr.mxu0 0.0
        %1261 = vmatpush1.msra.mxu0 0.0
        %1262 = vmatprep.subr.mxu0 0.0
        %1263 = vmatpush1.msra.mxu0 0.0
        %1264 = vmatprep.subr.mxu0 0.0
        %1265 = vmatpush1.msra.mxu0 0.0
        %1266 = vmatprep.subr.mxu0 0.0
        %1267 = vmatpush1.msra.mxu0 0.0
        %1268 = vmatprep.subr.mxu0 0.0
        %1269 = vmatpush1.msra.mxu0 0.0
        %1270 = vmatprep.subr.mxu0 0.0
        %1271 = vmatpush1.msra.mxu0 0.0
        %1272 = vmatprep.subr.mxu0 0.0
        %1273 = vmatpush1.msra.mxu0 0.0
        %1274 = vmatprep.subr.mxu0 0.0
        %1275 = vmatpush1.msra.mxu0 0.0
        %1276 = vmatprep.subr.mxu0 0.0
        %1277 = vmatpush1.msra.mxu0 0.0
        %1278 = vmatprep.subr.mxu0 0.0
        %1279 = vmatpush1.msra.mxu0 0.0
        %1280 = vmatprep.subr.mxu0 0.0
        %1281 = vmatpush1.msra.mxu0 0.0
        %1282 = vmatprep.subr.mxu0 0.0
        %1283 = vmatpush1.msra.mxu0 0.0
        %1284 = vmatprep.subr.mxu0 0.0
        %1285 = vmatpush1.msra.mxu0 0.0
        %1286 = vmatprep.subr.mxu0 0.0
        %1287 = vmatpush1.msra.mxu0 0.0
        %1288 = vmatprep.subr.mxu0 0.0
        %1289 = vmatpush1.msra.mxu0 0.0
        %1290 = vmatprep.subr.mxu0 0.0
        %1291 = vmatpush1.msra.mxu0 0.0
        %1292 = vmatprep.mubr.f32.mxu0 0.0
        %1293 = vmatmul.mubr.f32.gmra.mrb[0].mxu0 %v1226
        %v1294 = vpop.f32.mrb[0].mxu0
        %v1295 = vadd.f32 0.0, %v1294
        %v1296 = vpop.f32.mrb[0].mxu0
        %1297 = vdwg.mxu0
        %v1299 = vsel %vm713, %v1095, 0
        %1301 = vmatprep.subr.mxu0 0.0
        %1302 = vmatpush1.msra.mxu0 %v1150
        %1303 = vmatprep.subr.mxu0 0.0
        %1304 = vmatpush1.msra.mxu0 0.0
        %1305 = vmatprep.subr.mxu0 0.0
        %1306 = vmatpush1.msra.mxu0 0.0
        %1307 = vmatprep.subr.mxu0 0.0
        %1308 = vmatpush1.msra.mxu0 0.0
        %1309 = vmatprep.subr.mxu0 0.0
        %1310 = vmatpush1.msra.mxu0 0.0
        %1311 = vmatprep.subr.mxu0 0.0
        %1312 = vmatpush1.msra.mxu0 0.0
        %1313 = vmatprep.subr.mxu0 0.0
        %1314 = vmatpush1.msra.mxu0 0.0
        %1315 = vmatprep.subr.mxu0 0.0
        %1316 = vmatpush1.msra.mxu0 0.0
        %1317 = vmatprep.subr.mxu0 0.0
        %1318 = vmatpush1.msra.mxu0 0.0
        %1319 = vmatprep.subr.mxu0 0.0
        %1320 = vmatpush1.msra.mxu0 0.0
        %1321 = vmatprep.subr.mxu0 0.0
        %1322 = vmatpush1.msra.mxu0 0.0
        %1323 = vmatprep.subr.mxu0 0.0
        %1324 = vmatpush1.msra.mxu0 0.0
        %1325 = vmatprep.subr.mxu0 0.0
        %1326 = vmatpush1.msra.mxu0 0.0
        %1327 = vmatprep.subr.mxu0 0.0
        %1328 = vmatpush1.msra.mxu0 0.0
        %1329 = vmatprep.subr.mxu0 0.0
        %1330 = vmatpush1.msra.mxu0 0.0
        %1331 = vmatprep.subr.mxu0 0.0
        %1332 = vmatpush1.msra.mxu0 0.0
        %1333 = vmatprep.subr.mxu0 0.0
        %1334 = vmatpush1.msra.mxu0 0.0
        %1335 = vmatprep.subr.mxu0 0.0
        %1336 = vmatpush1.msra.mxu0 0.0
        %1337 = vmatprep.subr.mxu0 0.0
        %1338 = vmatpush1.msra.mxu0 0.0
        %1339 = vmatprep.subr.mxu0 0.0
        %1340 = vmatpush1.msra.mxu0 0.0
        %1341 = vmatprep.subr.mxu0 0.0
        %1342 = vmatpush1.msra.mxu0 0.0
        %1343 = vmatprep.subr.mxu0 0.0
        %1344 = vmatpush1.msra.mxu0 0.0
        %1345 = vmatprep.subr.mxu0 0.0
        %1346 = vmatpush1.msra.mxu0 0.0
        %1347 = vmatprep.subr.mxu0 0.0
        %1348 = vmatpush1.msra.mxu0 0.0
        %1349 = vmatprep.subr.mxu0 0.0
        %1350 = vmatpush1.msra.mxu0 0.0
        %1351 = vmatprep.subr.mxu0 0.0
        %1352 = vmatpush1.msra.mxu0 0.0
        %1353 = vmatprep.subr.mxu0 0.0
        %1354 = vmatpush1.msra.mxu0 0.0
        %1355 = vmatprep.subr.mxu0 0.0
        %1356 = vmatpush1.msra.mxu0 0.0
        %1357 = vmatprep.subr.mxu0 0.0
        %1358 = vmatpush1.msra.mxu0 0.0
        %1359 = vmatprep.subr.mxu0 0.0
        %1360 = vmatpush1.msra.mxu0 0.0
        %1361 = vmatprep.subr.mxu0 0.0
        %1362 = vmatpush1.msra.mxu0 0.0
        %1363 = vmatprep.subr.mxu0 0.0
        %1364 = vmatpush1.msra.mxu0 0.0
        %1365 = vmatprep.mubr.f32.mxu0 0.0
        %1366 = vmatmul.mubr.f32.gmra.mrb[0].mxu0 %v1299
        %v1367 = vpop.f32.mrb[0].mxu0
        %v1368 = vadd.f32 0.0, %v1367
        %v1369 = vpop.f32.mrb[0].mxu0
        %1370 = vdwg.mxu0
        %v1372 = vsel %vm713, %v1143, 0
        %1374 = vmatprep.subr.mxu0 0.0
        %1375 = vmatpush1.msra.mxu0 %v1151
        %1376 = vmatprep.subr.mxu0 0.0
        %1377 = vmatpush1.msra.mxu0 0.0
        %1378 = vmatprep.subr.mxu0 0.0
        %1379 = vmatpush1.msra.mxu0 0.0
        %1380 = vmatprep.subr.mxu0 0.0
        %1381 = vmatpush1.msra.mxu0 0.0
        %1382 = vmatprep.subr.mxu0 0.0
        %1383 = vmatpush1.msra.mxu0 0.0
        %1384 = vmatprep.subr.mxu0 0.0
        %1385 = vmatpush1.msra.mxu0 0.0
        %1386 = vmatprep.subr.mxu0 0.0
        %1387 = vmatpush1.msra.mxu0 0.0
        %1388 = vmatprep.subr.mxu0 0.0
        %1389 = vmatpush1.msra.mxu0 0.0
        %1390 = vmatprep.subr.mxu0 0.0
        %1391 = vmatpush1.msra.mxu0 0.0
        %1392 = vmatprep.subr.mxu0 0.0
        %1393 = vmatpush1.msra.mxu0 0.0
        %1394 = vmatprep.subr.mxu0 0.0
        %1395 = vmatpush1.msra.mxu0 0.0
        %1396 = vmatprep.subr.mxu0 0.0
        %1397 = vmatpush1.msra.mxu0 0.0
        %1398 = vmatprep.subr.mxu0 0.0
        %1399 = vmatpush1.msra.mxu0 0.0
        %1400 = vmatprep.subr.mxu0 0.0
        %1401 = vmatpush1.msra.mxu0 0.0
        %1402 = vmatprep.subr.mxu0 0.0
        %1403 = vmatpush1.msra.mxu0 0.0
        %1404 = vmatprep.subr.mxu0 0.0
        %1405 = vmatpush1.msra.mxu0 0.0
        %1406 = vmatprep.subr.mxu0 0.0
        %1407 = vmatpush1.msra.mxu0 0.0
        %1408 = vmatprep.subr.mxu0 0.0
        %1409 = vmatpush1.msra.mxu0 0.0
        %1410 = vmatprep.subr.mxu0 0.0
        %1411 = vmatpush1.msra.mxu0 0.0
        %1412 = vmatprep.subr.mxu0 0.0
        %1413 = vmatpush1.msra.mxu0 0.0
        %1414 = vmatprep.subr.mxu0 0.0
        %1415 = vmatpush1.msra.mxu0 0.0
        %1416 = vmatprep.subr.mxu0 0.0
        %1417 = vmatpush1.msra.mxu0 0.0
        %1418 = vmatprep.subr.mxu0 0.0
        %1419 = vmatpush1.msra.mxu0 0.0
        %1420 = vmatprep.subr.mxu0 0.0
        %1421 = vmatpush1.msra.mxu0 0.0
        %1422 = vmatprep.subr.mxu0 0.0
        %1423 = vmatpush1.msra.mxu0 0.0
        %1424 = vmatprep.subr.mxu0 0.0
        %1425 = vmatpush1.msra.mxu0 0.0
        %1426 = vmatprep.subr.mxu0 0.0
        %1427 = vmatpush1.msra.mxu0 0.0
        %1428 = vmatprep.subr.mxu0 0.0
        %1429 = vmatpush1.msra.mxu0 0.0
        %1430 = vmatprep.subr.mxu0 0.0
        %1431 = vmatpush1.msra.mxu0 0.0
        %1432 = vmatprep.subr.mxu0 0.0
        %1433 = vmatpush1.msra.mxu0 0.0
        %1434 = vmatprep.subr.mxu0 0.0
        %1435 = vmatpush1.msra.mxu0 0.0
        %1436 = vmatprep.subr.mxu0 0.0
        %1437 = vmatpush1.msra.mxu0 0.0
        %1438 = vmatprep.mubr.f32.mxu0 0.0
        %1439 = vmatmul.mubr.f32.gmra.mrb[0].mxu0 %v1372
        %v1440 = vpop.f32.mrb[0].mxu0
        %v1441 = vadd.f32 0.0, %v1440
        %v1442 = vpop.f32.mrb[0].mxu0
        %1443 = vdwg.mxu0
        %v1444 = vsel %vm415, %v1222, 0.0
        %v1445 = vsel %vm415, %v1295, 0.0
        %v1446 = vadd.f32 %v1444, %v1445
        %v1447 = vsel %vm415, %v1368, 0.0
        %v1448 = vadd.f32 %v1446, %v1447
        %v1449 = vsel %vm415, %v1441, 0.0
        %v1450 = vadd.f32 %v1448, %v1449
        %v1451 = vld [vmem:[%s5] sm:$0x1]
        %v1453 = vlaneseq
        %v1454 = vshrl.u32 %v1453, 7
        %v1455 = vsub.s32 0, %v1454
        %v1456 = vrot.slane %v1451, %v1455
        %v1458 = vadd.f32 %v1450, %v1456
        %v1459 = vld [vmem:[%s6] sm:$0xff]
        %v1460 = vld [vmem:[%s6 + $0x8] sm:$0xff]
        %v1461 = vld [vmem:[%s6 + $0x10] sm:$0xff]
        %v1462 = vld [vmem:[%s6 + $0x18] sm:$0xff]
        %v1463 = vld [vmem:[%s7] sm:$0x1]
        %v1465 = vlaneseq
        %v1466 = vshrl.u32 %v1465, 7
        %v1467 = vsub.s32 0, %v1466
        %v1468 = vrot.slane %v1463, %v1467
        %v1471 = vsel %vm415, %v1458, 0
        %1473 = vmatprep.subr.mxu0 0.0
        %1474 = vmatpush1.msra.mxu0 %v1459
        %1475 = vmatprep.subr.mxu0 0.0
        %1476 = vmatpush1.msra.mxu0 %v1460
        %1477 = vmatprep.subr.mxu0 0.0
        %1478 = vmatpush1.msra.mxu0 %v1461
        %1479 = vmatprep.subr.mxu0 0.0
        %1480 = vmatpush1.msra.mxu0 %v1462
        %1481 = vmatprep.subr.mxu0 0.0
        %1482 = vmatpush1.msra.mxu0 0.0
        %1483 = vmatprep.subr.mxu0 0.0
        %1484 = vmatpush1.msra.mxu0 0.0
        %1485 = vmatprep.subr.mxu0 0.0
        %1486 = vmatpush1.msra.mxu0 0.0
        %1487 = vmatprep.subr.mxu0 0.0
        %1488 = vmatpush1.msra.mxu0 0.0
        %1489 = vmatprep.subr.mxu0 0.0
        %1490 = vmatpush1.msra.mxu0 0.0
        %1491 = vmatprep.subr.mxu0 0.0
        %1492 = vmatpush1.msra.mxu0 0.0
        %1493 = vmatprep.subr.mxu0 0.0
        %1494 = vmatpush1.msra.mxu0 0.0
        %1495 = vmatprep.subr.mxu0 0.0
        %1496 = vmatpush1.msra.mxu0 0.0
        %1497 = vmatprep.subr.mxu0 0.0
        %1498 = vmatpush1.msra.mxu0 0.0
        %1499 = vmatprep.subr.mxu0 0.0
        %1500 = vmatpush1.msra.mxu0 0.0
        %1501 = vmatprep.subr.mxu0 0.0
        %1502 = vmatpush1.msra.mxu0 0.0
        %1503 = vmatprep.subr.mxu0 0.0
        %1504 = vmatpush1.msra.mxu0 0.0
        %1505 = vmatprep.subr.mxu0 0.0
        %1506 = vmatpush1.msra.mxu0 0.0
        %1507 = vmatprep.subr.mxu0 0.0
        %1508 = vmatpush1.msra.mxu0 0.0
        %1509 = vmatprep.subr.mxu0 0.0
        %1510 = vmatpush1.msra.mxu0 0.0
        %1511 = vmatprep.subr.mxu0 0.0
        %1512 = vmatpush1.msra.mxu0 0.0
        %1513 = vmatprep.subr.mxu0 0.0
        %1514 = vmatpush1.msra.mxu0 0.0
        %1515 = vmatprep.subr.mxu0 0.0
        %1516 = vmatpush1.msra.mxu0 0.0
        %1517 = vmatprep.subr.mxu0 0.0
        %1518 = vmatpush1.msra.mxu0 0.0
        %1519 = vmatprep.subr.mxu0 0.0
        %1520 = vmatpush1.msra.mxu0 0.0
        %1521 = vmatprep.subr.mxu0 0.0
        %1522 = vmatpush1.msra.mxu0 0.0
        %1523 = vmatprep.subr.mxu0 0.0
        %1524 = vmatpush1.msra.mxu0 0.0
        %1525 = vmatprep.subr.mxu0 0.0
        %1526 = vmatpush1.msra.mxu0 0.0
        %1527 = vmatprep.subr.mxu0 0.0
        %1528 = vmatpush1.msra.mxu0 0.0
        %1529 = vmatprep.subr.mxu0 0.0
        %1530 = vmatpush1.msra.mxu0 0.0
        %1531 = vmatprep.subr.mxu0 0.0
        %1532 = vmatpush1.msra.mxu0 0.0
        %1533 = vmatprep.subr.mxu0 0.0
        %1534 = vmatpush1.msra.mxu0 0.0
        %1535 = vmatprep.subr.mxu0 0.0
        %1536 = vmatpush1.msra.mxu0 0.0
        %1537 = vmatprep.mubr.f32.mxu0 0.0
        %1538 = vmatmul.mubr.f32.gmra.mrb[0].mxu0 %v1471
        %v1539 = vpop.f32.mrb[0].mxu0
        %v1540 = vadd.f32 %v1468, %v1539
        %v1541 = vpop.f32.mrb[0].mxu0
        %1542 = vdwg.mxu0
        %v1543 = vadd.f32 %v1540, %v370
        %v1544 = vsel %vm415, %v1543, 0.0
        %1545 = vadd.xlane.f32.xlu0 %v1544
        %v1546 = vpop.xlane.xlu0 %1545
        %v1547 = vrcp.pop 32.0
        %v1548 = vmul.f32 %v1546, %v1547
        %v1549 = vsub.f32 %v1543, %v1548
        %v1550 = vmul.f32 %v1549, %v1549
        %v1551 = vsel %vm415, %v1550, 0.0
        %1552 = vadd.xlane.f32.xlu0 %v1551
        %v1553 = vpop.xlane.xlu0 %1552
        %v1554 = vmul.f32 %v1553, %v1547
        %v1555 = vadd.f32 %v1554, 1e-05
        %v1556 = vrsqrt.pop %v1555
        %v1557 = vmul.f32 %v1549, %v1556
        %v1558 = vld [vmem:[%s8] sm:$0x1]
        %v1560 = vlaneseq
        %v1561 = vshrl.u32 %v1560, 7
        %v1562 = vsub.s32 0, %v1561
        %v1563 = vrot.slane %v1558, %v1562
        %v1565 = vmul.f32 %v1557, %v1563
        %v1566 = vld [vmem:[%s9] sm:$0x1]
        %v1568 = vlaneseq
        %v1569 = vshrl.u32 %v1568, 7
        %v1570 = vsub.s32 0, %v1569
        %v1571 = vrot.slane %v1566, %v1570
        %v1573 = vadd.f32 %v1565, %v1571
        %1574 = vst.msk [vmem:[%s361] sm:$0xff] %vm415, %v1573
        %s1575 = sand.u32 %s252, 1
        %s1576 = scalar_lea.sflag [#allocation3], %s1575
        %s1577 = sand.u32 %s252, 1
        %s1578 = smul.addr %s1577, 8
        %s1579 = scalar_lea.vmem [#allocation2], %s1578
        // Predicated region
        $region61: #{tpu_custom_call.1} parent=59 // pred_check
          %p1580 = pneg %p262
        $region62: #{tpu_custom_call.1} parent=59 // pred_check_branch
          %1582 = sbr.rel (%p1580) target = $region64
        $region63: #{tpu_custom_call.1} parent=59 // pred_region
          %s1584 = ssub.s32 128, 128
          %1585 = vsyncadd %s1576, %s1584
          %s1586 = smul.addr %s24, 128
          %s1587 = scalar_lea.hbm %s10, %s1586
          %s1589 = sshll.u32 %s1579, 4
          %s1590 = int_to_ptr.vmem [resolvable:$true] %s1589
          %1592 = dma.vmem_to_hbm [thread:$0]  %s1590, 128, %s1587, %s1576
        $region64: #{tpu_custom_call.1} parent=59 // pred_fallthru
          _
      $region60: #{tpu_custom_call.1} parent=5 // pred_fallthru
        _
      %p1593 = scmp.le.s32.totalorder 2, %s19
      // Predicated region
      $region65: #{tpu_custom_call.1} parent=5 // pred_check
        %p1594 = pneg %p1593
      $region66: #{tpu_custom_call.1} parent=5 // pred_check_branch
        %1596 = sbr.rel (%p1594) target = $region68
      $region67: #{tpu_custom_call.1} parent=5 // pred_region
        %s1597 = ssub.s32 %s19, 2
        // Predicated region
        $region69: #{tpu_custom_call.1} parent=67 // pred_check
          %p1598 = pneg %p268
        $region70: #{tpu_custom_call.1} parent=67 // pred_check_branch
          %1600 = sbr.rel (%p1598) target = $region72
        $region71: #{tpu_custom_call.1} parent=67 // pred_region
          %s1601 = sand.u32 %s253, 1
          %s1602 = scalar_lea.sflag [#allocation3], %s1601
          %s1603 = sand.u32 %s253, 1
          %s1604 = smul.addr %s1603, 8
          %s1605 = scalar_lea.vmem [#allocation2], %s1604
          %1606 = dma.done %s1602, 128
        $region72: #{tpu_custom_call.1} parent=67 // pred_fallthru
          _
      $region68: #{tpu_custom_call.1} parent=5 // pred_fallthru
        _
    $region6: #{tpu_custom_call.1} parent=1 // loop_footer
      %s23 = sadd.s32 1, %s19
    $region7: #{tpu_custom_call.1} parent=1 // loop_footer_branch
      %18 = sbr.rel target = $region3
    $region8: #{tpu_custom_call.1} parent=1 // loop_exit
      _
    %1607 = vsyncpa [#allocation3], 1
    %s1608 = scalar_lea.sflag [#allocation3], 1
    %1609 = vsyncpa %s1608, 1

</llo_original>
